<compile_context>
chip_gen: v6e
topology: v6e:2x2x1
jax: 0.10.0
libtpu: 0.0.40
codegen_flags: <defaults>
</compile_context>

<pallas_src>
import functools

import jax
import jax.numpy as jnp
from jax.experimental import pallas as pl
from jax.experimental.pallas import tpu as pltpu


def _mbconv_residual_kernel(
    x_ref, w1_ref, b1_ref, dw_ref, b2_ref, w3_ref, b3_ref, mask_ref, o_ref,
    *, W, k, lanes, apply_residual, dw_dtype,
):
    """One chunk of whole images per grid step (pixels of all images on lanes).

    x_ref   : (Cin,  lanes) f32   lanes = imgs_per_chunk * H * W (lane-dense)
    w1_ref  : (Cmid, Cin)   bf16  expand weights, BN scale folded in
    b1_ref  : (Cmid, 1)     f32
    dw_ref  : (Cmid, k*k)   f32   depthwise taps, BN scale folded in
    b2_ref  : (Cmid, 1)     f32
    w3_ref  : (Cout, Cmid)  bf16  project weights, BN scale folded in
    b3_ref  : (Cout, 1)     f32
    mask_ref: (k*k, lanes)  f32   0/1 spatial validity mask per tap (per image)
    o_ref   : (Cout, lanes) f32
    """
    p = k // 2
    x2d = x_ref[...]                                         # (Cin, lanes) f32

    # ---- 1x1 expansion conv (BN scale folded into w1): bias + ReLU ---------
    t = jnp.dot(w1_ref[...], x2d.astype(jnp.bfloat16),
                preferred_element_type=jnp.float32)          # (Cmid, lanes) f32
    t = jnp.maximum(t + b1_ref[...], 0.0)

    # ---- k x k depthwise conv, stride 1, 'same' padding ---------------------
    # A spatial shift (oy, ox) is a lane roll by oy*W + ox; circular wrap,
    # out-of-image taps AND cross-image leakage (batch folded on lanes) are all
    # killed by the precomputed per-image masks.  Everything stays in registers
    # (XLU roll + VPU mul/add): no VMEM pad scratch, no unaligned slices.
    # On v6e/v7x the rolled operand is bf16 (dw_dtype) to halve XLU traffic;
    # accumulation is always f32.
    t_dw = t.astype(dw_dtype)
    dw_all = dw_ref[...]                                     # (Cmid, k*k)
    mask_all = mask_ref[...]                                 # (k*k, lanes)
    taps = [dw_all[:, i:i + 1] for i in range(k * k)]        # hoisted (Cmid, 1)
    masks = [mask_all[i:i + 1, :] for i in range(k * k)]     # hoisted (1, lanes)

    acc = jnp.zeros_like(t)                                  # (Cmid, lanes) f32
    for dy in range(k):
        for dx in range(k):
            i = dy * k + dx
            s = (dy - p) * W + (dx - p)                      # flat pixel shift
            if s == 0:
                acc = acc + t_dw * taps[i]                   # center: no roll/mask
            else:
                shifted = pltpu.roll(t_dw, shift=(-s) % lanes, axis=1)
                acc = acc + shifted * taps[i] * masks[i]
    t2 = jnp.maximum(acc + b2_ref[...], 0.0)                 # (Cmid, lanes)

    # ---- 1x1 projection conv (BN scale folded into w3): bias ----------------
    y = jnp.dot(w3_ref[...], t2.astype(jnp.bfloat16),
                preferred_element_type=jnp.float32)          # (Cout, lanes) f32
    y = y + b3_ref[...]

    if apply_residual:                                       # _ResidualBlock: + x
        y = y + x2d                                          # Cin == Cout, stride == 1

    o_ref[...] = y.astype(o_ref.dtype)                       # lane-dense store


def _tap_masks(H, W, k):
    """(k*k, H*W) 0/1 masks: which output pixels see an in-image neighbor."""
    p = k // 2
    yy = jnp.arange(H).reshape(H, 1)
    xx = jnp.arange(W).reshape(1, W)
    rows = []
    for dy in range(k):
        for dx in range(k):
            oy, ox = dy - p, dx - p
            m = ((yy + oy >= 0) & (yy + oy < H) &
                 (xx + ox >= 0) & (xx + ox < W))
            rows.append(m.reshape(-1))
    return jnp.stack(rows).astype(jnp.float32)


def _bf16_depthwise_ok():
    """bf16 roll/MAC depthwise only where the VPU/XLU have bf16 (v6e, v7x)."""
    try:
        kind = jax.devices()[0].device_kind.lower()
    except Exception:
        return False
    return ("v6" in kind) or ("v7" in kind)


def _pick_imgs_per_chunk(N, HW, max_imgs):
    """Largest divisor of N per chunk that (a) fits the VMEM budget,
    (b) keeps chunk lanes a multiple of 128 unless single-chunk, and
    (c) prefers >=2 chunks so v7x's two TensorCores both get work."""
    pick, best = N, None                      # fallback: single full-extent chunk
    for d in range(1, N + 1):
        if N % d:
            continue
        nchunks = N // d
        if nchunks > 1 and (d * HW) % 128:
            continue                          # keep every block lane-dense
        if d > max_imgs and d > 1:
            continue                          # respect VMEM budget (d=1 always ok)
        key = (nchunks >= 2, d)               # prefer both TCs busy, then bigger fold
        if best is None or key > best:
            best, pick = key, d
    return pick


def mbconv_residual_block(x_nchw, params, *, kernel_size, stride,
                          apply_residual=True, dw_bf16=None):
    """x_nchw: (N, Cin, H, W) float32.  Returns (N, Cout, H, W) float32."""
    assert kernel_size in (3, 5)
    if stride != 1:
        # TODO(synk): stride=2 depthwise not implemented in the lane-roll
        # formulation; _ResidualBlock only ever wraps stride-1 bodies anyway.
        raise NotImplementedError("stride must be 1 for a residual block")

    N, Cin, H, W = x_nchw.shape
    w1, s1, b1, dw, s2, b2, w3, s3, b3 = params
    Cmid, Cout = w1.shape[1], w3.shape[1]
    if apply_residual:
        assert Cin == Cout, "residual add requires Cin == Cout"
    if dw_bf16 is None:
        dw_bf16 = _bf16_depthwise_ok()
    dw_dtype = jnp.bfloat16 if dw_bf16 else jnp.float32

    k = kernel_size
    HW = H * W

    # Fold BN scales into the conv weights; only biases go to the kernel.
    w1t = (w1 * s1).T.astype(jnp.bfloat16)                   # (Cmid, Cin)
    dwt = (dw * s2).T.astype(jnp.float32)                    # (Cmid, k*k)
    w3t = (w3 * s3).T.astype(jnp.bfloat16)                   # (Cout, Cmid)
    b1c = b1.reshape(Cmid, 1).astype(jnp.float32)
    b2c = b2.reshape(Cmid, 1).astype(jnp.float32)
    b3c = b3.reshape(Cout, 1).astype(jnp.float32)

    # ---- chunking: groups of whole images on the lane axis ------------------
    # rough per-image VMEM: t/acc/shifted intermediates + double-buffered x/out
    # blocks + double-buffered tap masks.
    per_img = 4 * HW * (3 * Cmid + 2 * (Cin + Cout) + 2 * k * k)
    budget = 10 << 20                                        # fits v5e's 16 MiB default
    max_imgs = max(1, budget // max(per_img, 1))
    imgs = _pick_imgs_per_chunk(N, HW, max_imgs)
    num_chunks = N // imgs
    lanes = imgs * HW

    # Layout plumbing (wrapper-side, not compute): channels on sublanes,
    # (image, pixel) on lanes.
    x_cl = jnp.transpose(x_nchw, (1, 0, 2, 3)).reshape(Cin, N * HW)
    masks = jnp.tile(_tap_masks(H, W, k), (1, imgs))         # (k*k, lanes)

    kern = functools.partial(_mbconv_residual_kernel, W=W, k=k, lanes=lanes,
                             apply_residual=apply_residual, dw_dtype=dw_dtype)
    consts = (w1t, b1c, dwt, b2c, w3t, b3c, masks)

    def _const_spec(a):
        nd = a.ndim
        return pl.BlockSpec(a.shape, lambda c, _nd=nd: (0,) * _nd)

    cp_kwargs = dict(dimension_semantics=("parallel",))      # 2 TCs on v7x
    est = per_img * imgs + (1 << 20)
    if est > (14 << 20):
        # A single image's working set needs more than v5e's 16 MiB default
        # scoped VMEM: raise the limit (stay under v7x's 64 MiB physical).
        cp_kwargs["vmem_limit_bytes"] = int(min(est * 5 // 4, 48 << 20))
        # TODO(synk): beyond ~38 MiB per image (huge HW * Cmid), add a
        # row-halo-tiled grid axis over H instead of whole-image chunks.

    out = pl.pallas_call(
        kern,
        out_shape=jax.ShapeDtypeStruct((Cout, N * HW), jnp.float32),
        grid=(num_chunks,),
        in_specs=[pl.BlockSpec((Cin, lanes), lambda c: (0, c))]
                 + [_const_spec(a) for a in consts],
        out_specs=pl.BlockSpec((Cout, lanes), lambda c: (0, c)),
        compiler_params=pltpu.CompilerParams(**cp_kwargs),
    )(x_cl, *consts)

    return jnp.transpose(out.reshape(Cout, N, H, W), (1, 0, 2, 3))


def _fold_bn(gamma, beta, mean, var, eps=1e-5):
    scale = gamma / jnp.sqrt(var + eps)
    bias = beta - mean * scale
    return (scale.reshape(1, -1).astype(jnp.float32),
            bias.reshape(1, -1).astype(jnp.float32))


def make_params(key, in_ch, out_ch, kernel_size, expansion_factor):
    mid_ch = in_ch * expansion_factor
    ks = jax.random.split(key, 16)

    w1 = 0.1 * jax.random.normal(ks[0], (in_ch, mid_ch), jnp.float32)          # 1x1 expand
    dw = 0.1 * jax.random.normal(ks[1], (kernel_size * kernel_size, mid_ch),
                                 jnp.float32)                                   # depthwise taps
    w3 = 0.1 * jax.random.normal(ks[2], (mid_ch, out_ch), jnp.float32)          # 1x1 project

    def bn(kg, kb, km, kv, c):
        gamma = 1.0 + 0.1 * jax.random.normal(kg, (c,), jnp.float32)
        beta = 0.1 * jax.random.normal(kb, (c,), jnp.float32)
        mean = 0.1 * jax.random.normal(km, (c,), jnp.float32)
        var = 0.5 + jnp.abs(jax.random.normal(kv, (c,), jnp.float32))
        return _fold_bn(gamma, beta, mean, var)

    s1, b1 = bn(ks[3], ks[4], ks[5], ks[6], mid_ch)
    s2, b2 = bn(ks[7], ks[8], ks[9], ks[10], mid_ch)
    s3, b3 = bn(ks[11], ks[12], ks[13], ks[14], out_ch)
    return (w1, s1, b1, dw, s2, b2, w3, s3, b3)


def _reference(x_nchw, params, *, kernel_size, apply_residual=True,
               bf16_depthwise=False):
    """Pure-JAX forward mirroring the kernel's bf16 rounding points."""
    w1, s1, b1, dw, s2, b2, w3, s3, b3 = params
    w1f = (w1 * s1).astype(jnp.bfloat16).astype(jnp.float32)
    dwf = (dw * s2).astype(jnp.float32)
    w3f = (w3 * s3).astype(jnp.bfloat16).astype(jnp.float32)
    x = jnp.transpose(x_nchw, (0, 2, 3, 1))                  # NHWC
    N, H, W, _ = x.shape
    k, p = kernel_size, kernel_size // 2
    xb = x.astype(jnp.bfloat16).astype(jnp.float32)
    t = jnp.maximum(jnp.einsum("nhwc,cd->nhwd", xb, w1f) + b1.reshape(-1), 0.0)
    if bf16_depthwise:
        t = t.astype(jnp.bfloat16).astype(jnp.float32)
    tp = jnp.pad(t, ((0, 0), (p, p), (p, p), (0, 0)))
    acc = jnp.zeros_like(t)
    for dy in range(k):
        for dx in range(k):
            acc = acc + tp[:, dy:dy + H, dx:dx + W, :] * dwf[dy * k + dx]
    t2 = jnp.maximum(acc + b2.reshape(-1), 0.0)
    t2b = t2.astype(jnp.bfloat16).astype(jnp.float32)
    y = jnp.einsum("nhwd,de->nhwe", t2b, w3f) + b3.reshape(-1)
    if apply_residual:
        y = y + x
    return jnp.transpose(y, (0, 3, 1, 2))


if __name__ == "__main__":
    key = jax.random.PRNGKey(0)
    k_x, k_p = jax.random.split(key)

    # _ResidualBlock wrapping an MBConv body:
    #   in_ch=8, out_ch=8, kernel_size=3, stride=1, expansion_factor=3
    # N=4 exercises the batch-folded path (2 chunks x 2 images on the lanes).
    N, in_ch, H, W = 4, 8, 16, 16
    out_ch, kernel_size, stride, expansion = 8, 3, 1, 3

    x = jax.random.normal(k_x, (N, in_ch, H, W), jnp.float32)   # NCHW like PyTorch
    params = make_params(k_p, in_ch, out_ch, kernel_size, expansion)

    use_bf16_dw = _bf16_depthwise_ok()
    y = mbconv_residual_block(x, params, kernel_size=kernel_size, stride=stride,
                              apply_residual=True, dw_bf16=use_bf16_dw)
    y = jax.block_until_ready(y)
    assert y.shape == (N, out_ch, H, W)
    assert bool(jnp.all(jnp.isfinite(y)))

    y_ref = _reference(x, params, kernel_size=kernel_size, apply_residual=True,
                       bf16_depthwise=use_bf16_dw)
    err = float(jnp.max(jnp.abs(y - y_ref)))
    assert err < 5e-3, f"mismatch vs reference: max abs err = {err}"
    print("KERNEL_OK")
</pallas_src>

<mosaic_0001>
module attributes {stable_mosaic.version = 11 : i64} {
  func.func @_mbconv_residual_kernel(%arg0: i32, %arg1: memref<8x512xf32, #tpu.memory_space<vmem>>, %arg2: memref<24x8xbf16, #tpu.memory_space<vmem>>, %arg3: memref<24x1xf32, #tpu.memory_space<vmem>>, %arg4: memref<24x9xf32, #tpu.memory_space<vmem>>, %arg5: memref<24x1xf32, #tpu.memory_space<vmem>>, %arg6: memref<8x24xbf16, #tpu.memory_space<vmem>>, %arg7: memref<8x1xf32, #tpu.memory_space<vmem>>, %arg8: memref<9x512xf32, #tpu.memory_space<vmem>>, %arg9: memref<8x512xf32, #tpu.memory_space<vmem>>) attributes {dimension_semantics = [#tpu.dimension_semantics<parallel>], iteration_bounds = array<i64: 2>, scalar_prefetch = 0 : i64, scratch_operands = 0 : i64, tpu.core_type = #tpu.core_type<tc>, window_params = [{transform_indices = @transform_0, window_bounds = array<i64: 8, 512>}, {pipeline_mode = #tpu.pipeline_mode<synchronous>, transform_indices = @transform_1, window_bounds = array<i64: 24, 8>}, {pipeline_mode = #tpu.pipeline_mode<synchronous>, transform_indices = @transform_2, window_bounds = array<i64: 24, 1>}, {pipeline_mode = #tpu.pipeline_mode<synchronous>, transform_indices = @transform_3, window_bounds = array<i64: 24, 9>}, {pipeline_mode = #tpu.pipeline_mode<synchronous>, transform_indices = @transform_4, window_bounds = array<i64: 24, 1>}, {pipeline_mode = #tpu.pipeline_mode<synchronous>, transform_indices = @transform_5, window_bounds = array<i64: 8, 24>}, {pipeline_mode = #tpu.pipeline_mode<synchronous>, transform_indices = @transform_6, window_bounds = array<i64: 8, 1>}, {pipeline_mode = #tpu.pipeline_mode<synchronous>, transform_indices = @transform_7, window_bounds = array<i64: 9, 512>}, {transform_indices = @transform_8, window_bounds = array<i64: 8, 512>}]} {
    %c0 = arith.constant 0 : index
    %c0_0 = arith.constant 0 : index
    %0 = vector.load %arg1[%c0, %c0_0] : memref<8x512xf32, #tpu.memory_space<vmem>>, vector<8x512xf32>
    %c0_1 = arith.constant 0 : index
    %c0_2 = arith.constant 0 : index
    %1 = vector.load %arg2[%c0_1, %c0_2] : memref<24x8xbf16, #tpu.memory_space<vmem>>, vector<24x8xbf16>
    %2 = arith.truncf %0 : vector<8x512xf32> to vector<8x512xbf16>
    %cst = arith.constant dense<0.000000e+00> : vector<24x512xf32>
    %3 = tpu.matmul %1, %2, %cst {dimension_numbers = #tpu.dot_dimension_numbers<[1], [0], [0], [1], [0, 0, 1, 1], [], []>} : vector<24x8xbf16>, vector<8x512xbf16>, vector<24x512xf32> -> vector<24x512xf32>
    %c0_3 = arith.constant 0 : index
    %c0_4 = arith.constant 0 : index
    %4 = vector.load %arg3[%c0_3, %c0_4] : memref<24x1xf32, #tpu.memory_space<vmem>>, vector<24x1xf32>
    %5 = vector.broadcast %4 : vector<24x1xf32> to vector<24x512xf32>
    %6 = arith.addf %3, %5 : vector<24x512xf32>
    %cst_5 = arith.constant 0.000000e+00 : f32
    %7 = vector.broadcast %cst_5 : f32 to vector<24x512xf32>
    %8 = arith.maximumf %6, %7 : vector<24x512xf32>
    %c0_6 = arith.constant 0 : index
    %c0_7 = arith.constant 0 : index
    %9 = vector.load %arg4[%c0_6, %c0_7] : memref<24x9xf32, #tpu.memory_space<vmem>>, vector<24x9xf32>
    %c0_8 = arith.constant 0 : index
    %c0_9 = arith.constant 0 : index
    %10 = vector.load %arg8[%c0_8, %c0_9] : memref<9x512xf32, #tpu.memory_space<vmem>>, vector<9x512xf32>
    %11 = vector.extract_strided_slice %9 {offsets = [0, 0], sizes = [24, 1], strides = [1, 1]} : vector<24x9xf32> to vector<24x1xf32>
    %12 = vector.extract_strided_slice %9 {offsets = [0, 1], sizes = [24, 1], strides = [1, 1]} : vector<24x9xf32> to vector<24x1xf32>
    %13 = vector.extract_strided_slice %9 {offsets = [0, 2], sizes = [24, 1], strides = [1, 1]} : vector<24x9xf32> to vector<24x1xf32>
    %14 = vector.extract_strided_slice %9 {offsets = [0, 3], sizes = [24, 1], strides = [1, 1]} : vector<24x9xf32> to vector<24x1xf32>
    %15 = vector.extract_strided_slice %9 {offsets = [0, 4], sizes = [24, 1], strides = [1, 1]} : vector<24x9xf32> to vector<24x1xf32>
    %16 = vector.extract_strided_slice %9 {offsets = [0, 5], sizes = [24, 1], strides = [1, 1]} : vector<24x9xf32> to vector<24x1xf32>
    %17 = vector.extract_strided_slice %9 {offsets = [0, 6], sizes = [24, 1], strides = [1, 1]} : vector<24x9xf32> to vector<24x1xf32>
    %18 = vector.extract_strided_slice %9 {offsets = [0, 7], sizes = [24, 1], strides = [1, 1]} : vector<24x9xf32> to vector<24x1xf32>
    %19 = vector.extract_strided_slice %9 {offsets = [0, 8], sizes = [24, 1], strides = [1, 1]} : vector<24x9xf32> to vector<24x1xf32>
    %20 = vector.extract_strided_slice %10 {offsets = [0, 0], sizes = [1, 512], strides = [1, 1]} : vector<9x512xf32> to vector<1x512xf32>
    %21 = vector.extract_strided_slice %10 {offsets = [1, 0], sizes = [1, 512], strides = [1, 1]} : vector<9x512xf32> to vector<1x512xf32>
    %22 = vector.extract_strided_slice %10 {offsets = [2, 0], sizes = [1, 512], strides = [1, 1]} : vector<9x512xf32> to vector<1x512xf32>
    %23 = vector.extract_strided_slice %10 {offsets = [3, 0], sizes = [1, 512], strides = [1, 1]} : vector<9x512xf32> to vector<1x512xf32>
    %24 = vector.extract_strided_slice %10 {offsets = [5, 0], sizes = [1, 512], strides = [1, 1]} : vector<9x512xf32> to vector<1x512xf32>
    %25 = vector.extract_strided_slice %10 {offsets = [6, 0], sizes = [1, 512], strides = [1, 1]} : vector<9x512xf32> to vector<1x512xf32>
    %26 = vector.extract_strided_slice %10 {offsets = [7, 0], sizes = [1, 512], strides = [1, 1]} : vector<9x512xf32> to vector<1x512xf32>
    %27 = vector.extract_strided_slice %10 {offsets = [8, 0], sizes = [1, 512], strides = [1, 1]} : vector<9x512xf32> to vector<1x512xf32>
    %cst_10 = arith.constant 0.000000e+00 : f32
    %28 = vector.broadcast %cst_10 : f32 to vector<24x512xf32>
    %c17_i32 = arith.constant 17 : i32
    %29 = tpu.dynamic_rotate %8 by %c17_i32 dim 1 : vector<24x512xf32>, i32 -> vector<24x512xf32>
    %30 = vector.broadcast %11 : vector<24x1xf32> to vector<24x512xf32>
    %31 = arith.mulf %29, %30 : vector<24x512xf32>
    %32 = vector.broadcast %20 : vector<1x512xf32> to vector<24x512xf32>
    %33 = arith.mulf %31, %32 : vector<24x512xf32>
    %34 = arith.addf %28, %33 : vector<24x512xf32>
    %c16_i32 = arith.constant 16 : i32
    %35 = tpu.dynamic_rotate %8 by %c16_i32 dim 1 : vector<24x512xf32>, i32 -> vector<24x512xf32>
    %36 = vector.broadcast %12 : vector<24x1xf32> to vector<24x512xf32>
    %37 = arith.mulf %35, %36 : vector<24x512xf32>
    %38 = vector.broadcast %21 : vector<1x512xf32> to vector<24x512xf32>
    %39 = arith.mulf %37, %38 : vector<24x512xf32>
    %40 = arith.addf %34, %39 : vector<24x512xf32>
    %c15_i32 = arith.constant 15 : i32
    %41 = tpu.dynamic_rotate %8 by %c15_i32 dim 1 : vector<24x512xf32>, i32 -> vector<24x512xf32>
    %42 = vector.broadcast %13 : vector<24x1xf32> to vector<24x512xf32>
    %43 = arith.mulf %41, %42 : vector<24x512xf32>
    %44 = vector.broadcast %22 : vector<1x512xf32> to vector<24x512xf32>
    %45 = arith.mulf %43, %44 : vector<24x512xf32>
    %46 = arith.addf %40, %45 : vector<24x512xf32>
    %c1_i32 = arith.constant 1 : i32
    %47 = tpu.dynamic_rotate %8 by %c1_i32 dim 1 : vector<24x512xf32>, i32 -> vector<24x512xf32>
    %48 = vector.broadcast %14 : vector<24x1xf32> to vector<24x512xf32>
    %49 = arith.mulf %47, %48 : vector<24x512xf32>
    %50 = vector.broadcast %23 : vector<1x512xf32> to vector<24x512xf32>
    %51 = arith.mulf %49, %50 : vector<24x512xf32>
    %52 = arith.addf %46, %51 : vector<24x512xf32>
    %53 = vector.broadcast %15 : vector<24x1xf32> to vector<24x512xf32>
    %54 = arith.mulf %8, %53 : vector<24x512xf32>
    %55 = arith.addf %52, %54 : vector<24x512xf32>
    %c511_i32 = arith.constant 511 : i32
    %56 = tpu.dynamic_rotate %8 by %c511_i32 dim 1 : vector<24x512xf32>, i32 -> vector<24x512xf32>
    %57 = vector.broadcast %16 : vector<24x1xf32> to vector<24x512xf32>
    %58 = arith.mulf %56, %57 : vector<24x512xf32>
    %59 = vector.broadcast %24 : vector<1x512xf32> to vector<24x512xf32>
    %60 = arith.mulf %58, %59 : vector<24x512xf32>
    %61 = arith.addf %55, %60 : vector<24x512xf32>
    %c497_i32 = arith.constant 497 : i32
    %62 = tpu.dynamic_rotate %8 by %c497_i32 dim 1 : vector<24x512xf32>, i32 -> vector<24x512xf32>
    %63 = vector.broadcast %17 : vector<24x1xf32> to vector<24x512xf32>
    %64 = arith.mulf %62, %63 : vector<24x512xf32>
    %65 = vector.broadcast %25 : vector<1x512xf32> to vector<24x512xf32>
    %66 = arith.mulf %64, %65 : vector<24x512xf32>
    %67 = arith.addf %61, %66 : vector<24x512xf32>
    %c496_i32 = arith.constant 496 : i32
    %68 = tpu.dynamic_rotate %8 by %c496_i32 dim 1 : vector<24x512xf32>, i32 -> vector<24x512xf32>
    %69 = vector.broadcast %18 : vector<24x1xf32> to vector<24x512xf32>
    %70 = arith.mulf %68, %69 : vector<24x512xf32>
    %71 = vector.broadcast %26 : vector<1x512xf32> to vector<24x512xf32>
    %72 = arith.mulf %70, %71 : vector<24x512xf32>
    %73 = arith.addf %67, %72 : vector<24x512xf32>
    %c495_i32 = arith.constant 495 : i32
    %74 = tpu.dynamic_rotate %8 by %c495_i32 dim 1 : vector<24x512xf32>, i32 -> vector<24x512xf32>
    %75 = vector.broadcast %19 : vector<24x1xf32> to vector<24x512xf32>
    %76 = arith.mulf %74, %75 : vector<24x512xf32>
    %77 = vector.broadcast %27 : vector<1x512xf32> to vector<24x512xf32>
    %78 = arith.mulf %76, %77 : vector<24x512xf32>
    %79 = arith.addf %73, %78 : vector<24x512xf32>
    %c0_11 = arith.constant 0 : index
    %c0_12 = arith.constant 0 : index
    %80 = vector.load %arg5[%c0_11, %c0_12] : memref<24x1xf32, #tpu.memory_space<vmem>>, vector<24x1xf32>
    %81 = vector.broadcast %80 : vector<24x1xf32> to vector<24x512xf32>
    %82 = arith.addf %79, %81 : vector<24x512xf32>
    %cst_13 = arith.constant 0.000000e+00 : f32
    %83 = vector.broadcast %cst_13 : f32 to vector<24x512xf32>
    %84 = arith.maximumf %82, %83 : vector<24x512xf32>
    %c0_14 = arith.constant 0 : index
    %c0_15 = arith.constant 0 : index
    %85 = vector.load %arg6[%c0_14, %c0_15] : memref<8x24xbf16, #tpu.memory_space<vmem>>, vector<8x24xbf16>
    %86 = arith.truncf %84 : vector<24x512xf32> to vector<24x512xbf16>
    %cst_16 = arith.constant dense<0.000000e+00> : vector<8x512xf32>
    %87 = tpu.matmul %85, %86, %cst_16 {dimension_numbers = #tpu.dot_dimension_numbers<[1], [0], [0], [1], [0, 0, 1, 1], [], []>} : vector<8x24xbf16>, vector<24x512xbf16>, vector<8x512xf32> -> vector<8x512xf32>
    %c0_17 = arith.constant 0 : index
    %c0_18 = arith.constant 0 : index
    %88 = vector.load %arg7[%c0_17, %c0_18] : memref<8x1xf32, #tpu.memory_space<vmem>>, vector<8x1xf32>
    %89 = vector.broadcast %88 : vector<8x1xf32> to vector<8x512xf32>
    %90 = arith.addf %87, %89 : vector<8x512xf32>
    %91 = arith.addf %90, %0 : vector<8x512xf32>
    %c0_19 = arith.constant 0 : index
    %c0_20 = arith.constant 0 : index
    %92 = vector.load %arg9[%c0_19, %c0_20] : memref<8x512xf32, #tpu.memory_space<vmem>>, vector<8x512xf32>
    tpu.vector_store %arg9[%c0_19, %c0_20], %91 {strides = array<i32>} : memref<8x512xf32, #tpu.memory_space<vmem>>, vector<8x512xf32>,
    return
  }
  func.func @transform_0(%arg0: i32) -> (i32, i32) {
    %c0_i32 = arith.constant 0 : i32
    %c0_i32_0 = arith.constant 0 : i32
    return %c0_i32, %arg0 : i32, i32
  }
  func.func @transform_1(%arg0: i32) -> (i32, i32) {
    %c0_i32 = arith.constant 0 : i32
    %c0_i32_0 = arith.constant 0 : i32
    %c0_i32_1 = arith.constant 0 : i32
    return %c0_i32, %c0_i32_0 : i32, i32
  }
  func.func @transform_2(%arg0: i32) -> (i32, i32) {
    %c0_i32 = arith.constant 0 : i32
    %c0_i32_0 = arith.constant 0 : i32
    %c0_i32_1 = arith.constant 0 : i32
    return %c0_i32, %c0_i32_0 : i32, i32
  }
  func.func @transform_3(%arg0: i32) -> (i32, i32) {
    %c0_i32 = arith.constant 0 : i32
    %c0_i32_0 = arith.constant 0 : i32
    %c0_i32_1 = arith.constant 0 : i32
    return %c0_i32, %c0_i32_0 : i32, i32
  }
  func.func @transform_4(%arg0: i32) -> (i32, i32) {
    %c0_i32 = arith.constant 0 : i32
    %c0_i32_0 = arith.constant 0 : i32
    %c0_i32_1 = arith.constant 0 : i32
    return %c0_i32, %c0_i32_0 : i32, i32
  }
  func.func @transform_5(%arg0: i32) -> (i32, i32) {
    %c0_i32 = arith.constant 0 : i32
    %c0_i32_0 = arith.constant 0 : i32
    %c0_i32_1 = arith.constant 0 : i32
    return %c0_i32, %c0_i32_0 : i32, i32
  }
  func.func @transform_6(%arg0: i32) -> (i32, i32) {
    %c0_i32 = arith.constant 0 : i32
    %c0_i32_0 = arith.constant 0 : i32
    %c0_i32_1 = arith.constant 0 : i32
    return %c0_i32, %c0_i32_0 : i32, i32
  }
  func.func @transform_7(%arg0: i32) -> (i32, i32) {
    %c0_i32 = arith.constant 0 : i32
    %c0_i32_0 = arith.constant 0 : i32
    %c0_i32_1 = arith.constant 0 : i32
    return %c0_i32, %c0_i32_0 : i32, i32
  }
  func.func @transform_8(%arg0: i32) -> (i32, i32) {
    %c0_i32 = arith.constant 0 : i32
    %c0_i32_0 = arith.constant 0 : i32
    return %c0_i32, %arg0 : i32, i32
  }
}

</mosaic_0001>

<llo_original>
// kernel: tpu_custom_call.1
$region0: #{tpu_custom_call.1}
  #allocation0 [shape = 'u32[]', space=smem, size = 0x4, offset = 0x4, fixed_abs, tag = 'smem constant byte address 0x4 - core index']
  #allocation1 [shape = 'u32[144,128]{1,0:T(1,128)}', space=vmem, size = 0x12000, scoped, tag = 'internal scratch']
  %s0 = inlined_call_operand.vmem [shape: f32[8,1024], index: 0, kind: input, shape index: {}]
  %s1 = inlined_call_operand.vmem [shape: bf16[24,8], index: 1, kind: input, shape index: {}]
  %s2 = inlined_call_operand.vmem [shape: f32[24,1], index: 2, kind: input, shape index: {}]
  %s3 = inlined_call_operand.vmem [shape: f32[24,9], index: 3, kind: input, shape index: {}]
  %s4 = inlined_call_operand.vmem [shape: f32[24,1], index: 4, kind: input, shape index: {}]
  %s5 = inlined_call_operand.vmem [shape: bf16[8,24], index: 5, kind: input, shape index: {}]
  %s6 = inlined_call_operand.vmem [shape: f32[8,1], index: 6, kind: input, shape index: {}]
  %s7 = inlined_call_operand.hbm [shape: f32[9,512], index: 7, kind: input, shape index: {}]
  %s8 = inlined_call_operand.hbm [shape: f32[8,1024], index: 8, kind: output, shape index: {}]
  %s9 = sld [smem:[#allocation0]]
  $region69: #{tpu_custom_call.1} parent=0
    _
  %s11 = ssub.s32 1, %s9
  %s12 = scalar_select 0, %s11, %s9
  $region1: #{tpu_custom_call.1} parent=0
    #allocation2 [shape = 'u8[32768]{0}', space=vmem, size = 0x8000, scoped, tag = 'input window, operand 7, single buffered']
    #allocation3 [shape = 's32[2]{0}', space=sflag, size = 0x8, scoped, tag = 'scoped memory for tpu_custom_call.1']
    #allocation4 [shape = 's32[2]{0}', space=sflag, size = 0x8, scoped, tag = 'scoped memory for tpu_custom_call.1']
    #allocation5 [shape = 'u8[32768]{0}', space=vmem, size = 0x8000, scoped, tag = 'output window, operand 0']
    %13 = vsyncpa [#allocation3], 0
    %14 = vsyncpa [#allocation4], 0
    %s15 = scalar_lea.sflag [#allocation4], 1
    %16 = vsyncpa %s15, 0
    loop: start=0, step=1, limit=4
    $region2: #{tpu_custom_call.1} parent=1 // loop_pre_header
      _
    $region3: #{tpu_custom_call.1} parent=1 // loop_header
      %s18 = sphi 0, %s22
      %p19 = scmp.ge.s32.totalorder %s18, 4
      %s28 = sphi 0, %s30
      %s31 = sphi 0, %s28
      %s32 = sphi 0, %s31
      %s48 = sphi 0, %s32
      %s52 = sphi 0, %s52
      %s54 = sphi 0, %s52
      %s55 = sphi 0, %s54
      %s69 = sphi 0, %s55
      %s73 = sphi 0, %s73
      %s75 = sphi 0, %s73
      %s76 = sphi 0, %s75
      %s90 = sphi 0, %s76
      %s94 = sphi 0, %s94
      %s96 = sphi 0, %s94
      %s97 = sphi 0, %s96
      %s111 = sphi 0, %s97
      %s115 = sphi 0, %s115
      %s117 = sphi 0, %s115
      %s118 = sphi 0, %s117
      %s132 = sphi 0, %s118
      %s136 = sphi 0, %s136
      %s138 = sphi 0, %s136
      %s139 = sphi 0, %s138
      %s153 = sphi 0, %s139
      %s157 = sphi 0, %s157
      %s159 = sphi 0, %s157
      %s160 = sphi 0, %s159
      %s174 = sphi 0, %s160
      %s178 = sphi 0, %s178
      %s180 = sphi 0, %s178
      %s181 = sphi 0, %s180
      %s195 = sphi 0, %s181
      %s201 = sphi 0, %s203
      %s204 = sphi 0, %s201
      %s205 = sphi 0, %s204
      %s221 = sphi 0, %s205
    $region4: #{tpu_custom_call.1} parent=1 // loop_header_branch
      %21 = sbr.rel (%p19) target = $region8
    $region5: #{tpu_custom_call.1} parent=1 // loop_body
      %s23 = ssub.s32 %s18, 1
      %s24 = ssub.s32 %s18, 2
      %s25 = sadd.s32 %s18, 1
      %s26 = ssub.s32 %s18, %s25
      %p27 = scmp.eq.s32.totalorder %s26, 0
      %s29 = sadd.s32 %s28, 1
      %s30 = scalar_select %p27, %s28, %s29
      %p33 = pneg %p27
      %p34 = scmp.eq.s32.totalorder %s18, 1
      %p35 = por %p33, %p34
      %p36 = scmp.ne.s32.totalorder %s28, %s31
      %p37 = scmp.eq.s32.totalorder %s18, 0
      %p38 = por %p36, %p37
      %p39 = scmp.ne.s32.totalorder %s28, %s31
      %p40 = scmp.eq.s32.totalorder %s23, 1
      %p41 = por %p39, %p40
      %p42 = scmp.ne.s32.totalorder %s31, %s32
      %p43 = scmp.eq.s32.totalorder %s23, 0
      %p44 = por %p42, %p43
      %p45 = scmp.ne.s32.totalorder %s31, %s32
      %p46 = scmp.eq.s32.totalorder %s24, 1
      %p47 = por %p45, %p46
      %p49 = scmp.ne.s32.totalorder %s32, %s48
      %p50 = scmp.eq.s32.totalorder %s24, 0
      %p51 = por %p49, %p50
      %s53 = sadd.s32 %s52, 1
      %p56 = scmp.eq.s32.totalorder %s18, 1
      %p57 = scmp.ne.s32.totalorder %s52, %s54
      %p58 = scmp.eq.s32.totalorder %s18, 0
      %p59 = por %p57, %p58
      %p60 = scmp.ne.s32.totalorder %s52, %s54
      %p61 = scmp.eq.s32.totalorder %s23, 1
      %p62 = por %p60, %p61
      %p63 = scmp.ne.s32.totalorder %s54, %s55
      %p64 = scmp.eq.s32.totalorder %s23, 0
      %p65 = por %p63, %p64
      %p66 = scmp.ne.s32.totalorder %s54, %s55
      %p67 = scmp.eq.s32.totalorder %s24, 1
      %p68 = por %p66, %p67
      %p70 = scmp.ne.s32.totalorder %s55, %s69
      %p71 = scmp.eq.s32.totalorder %s24, 0
      %p72 = por %p70, %p71
      %s74 = sadd.s32 %s73, 1
      %p77 = scmp.eq.s32.totalorder %s18, 1
      %p78 = scmp.ne.s32.totalorder %s73, %s75
      %p79 = scmp.eq.s32.totalorder %s18, 0
      %p80 = por %p78, %p79
      %p81 = scmp.ne.s32.totalorder %s73, %s75
      %p82 = scmp.eq.s32.totalorder %s23, 1
      %p83 = por %p81, %p82
      %p84 = scmp.ne.s32.totalorder %s75, %s76
      %p85 = scmp.eq.s32.totalorder %s23, 0
      %p86 = por %p84, %p85
      %p87 = scmp.ne.s32.totalorder %s75, %s76
      %p88 = scmp.eq.s32.totalorder %s24, 1
      %p89 = por %p87, %p88
      %p91 = scmp.ne.s32.totalorder %s76, %s90
      %p92 = scmp.eq.s32.totalorder %s24, 0
      %p93 = por %p91, %p92
      %s95 = sadd.s32 %s94, 1
      %p98 = scmp.eq.s32.totalorder %s18, 1
      %p99 = scmp.ne.s32.totalorder %s94, %s96
      %p100 = scmp.eq.s32.totalorder %s18, 0
      %p101 = por %p99, %p100
      %p102 = scmp.ne.s32.totalorder %s94, %s96
      %p103 = scmp.eq.s32.totalorder %s23, 1
      %p104 = por %p102, %p103
      %p105 = scmp.ne.s32.totalorder %s96, %s97
      %p106 = scmp.eq.s32.totalorder %s23, 0
      %p107 = por %p105, %p106
      %p108 = scmp.ne.s32.totalorder %s96, %s97
      %p109 = scmp.eq.s32.totalorder %s24, 1
      %p110 = por %p108, %p109
      %p112 = scmp.ne.s32.totalorder %s97, %s111
      %p113 = scmp.eq.s32.totalorder %s24, 0
      %p114 = por %p112, %p113
      %s116 = sadd.s32 %s115, 1
      %p119 = scmp.eq.s32.totalorder %s18, 1
      %p120 = scmp.ne.s32.totalorder %s115, %s117
      %p121 = scmp.eq.s32.totalorder %s18, 0
      %p122 = por %p120, %p121
      %p123 = scmp.ne.s32.totalorder %s115, %s117
      %p124 = scmp.eq.s32.totalorder %s23, 1
      %p125 = por %p123, %p124
      %p126 = scmp.ne.s32.totalorder %s117, %s118
      %p127 = scmp.eq.s32.totalorder %s23, 0
      %p128 = por %p126, %p127
      %p129 = scmp.ne.s32.totalorder %s117, %s118
      %p130 = scmp.eq.s32.totalorder %s24, 1
      %p131 = por %p129, %p130
      %p133 = scmp.ne.s32.totalorder %s118, %s132
      %p134 = scmp.eq.s32.totalorder %s24, 0
      %p135 = por %p133, %p134
      %s137 = sadd.s32 %s136, 1
      %p140 = scmp.eq.s32.totalorder %s18, 1
      %p141 = scmp.ne.s32.totalorder %s136, %s138
      %p142 = scmp.eq.s32.totalorder %s18, 0
      %p143 = por %p141, %p142
      %p144 = scmp.ne.s32.totalorder %s136, %s138
      %p145 = scmp.eq.s32.totalorder %s23, 1
      %p146 = por %p144, %p145
      %p147 = scmp.ne.s32.totalorder %s138, %s139
      %p148 = scmp.eq.s32.totalorder %s23, 0
      %p149 = por %p147, %p148
      %p150 = scmp.ne.s32.totalorder %s138, %s139
      %p151 = scmp.eq.s32.totalorder %s24, 1
      %p152 = por %p150, %p151
      %p154 = scmp.ne.s32.totalorder %s139, %s153
      %p155 = scmp.eq.s32.totalorder %s24, 0
      %p156 = por %p154, %p155
      %s158 = sadd.s32 %s157, 1
      %p161 = scmp.eq.s32.totalorder %s18, 1
      %p162 = scmp.ne.s32.totalorder %s157, %s159
      %p163 = scmp.eq.s32.totalorder %s18, 0
      %p164 = por %p162, %p163
      %p165 = scmp.ne.s32.totalorder %s157, %s159
      %p166 = scmp.eq.s32.totalorder %s23, 1
      %p167 = por %p165, %p166
      %p168 = scmp.ne.s32.totalorder %s159, %s160
      %p169 = scmp.eq.s32.totalorder %s23, 0
      %p170 = por %p168, %p169
      %p171 = scmp.ne.s32.totalorder %s159, %s160
      %p172 = scmp.eq.s32.totalorder %s24, 1
      %p173 = por %p171, %p172
      %p175 = scmp.ne.s32.totalorder %s160, %s174
      %p176 = scmp.eq.s32.totalorder %s24, 0
      %p177 = por %p175, %p176
      %s179 = sadd.s32 %s178, 1
      %p182 = scmp.eq.s32.totalorder %s18, 1
      %p183 = scmp.ne.s32.totalorder %s178, %s180
      %p184 = scmp.eq.s32.totalorder %s18, 0
      %p185 = por %p183, %p184
      %p186 = scmp.ne.s32.totalorder %s178, %s180
      %p187 = scmp.eq.s32.totalorder %s23, 1
      %p188 = por %p186, %p187
      %p189 = scmp.ne.s32.totalorder %s180, %s181
      %p190 = scmp.eq.s32.totalorder %s23, 0
      %p191 = por %p189, %p190
      %p192 = scmp.ne.s32.totalorder %s180, %s181
      %p193 = scmp.eq.s32.totalorder %s24, 1
      %p194 = por %p192, %p193
      %p196 = scmp.ne.s32.totalorder %s181, %s195
      %p197 = scmp.eq.s32.totalorder %s24, 0
      %p198 = por %p196, %p197
      %s199 = ssub.s32 %s18, %s25
      %p200 = scmp.eq.s32.totalorder %s199, 0
      %s202 = sadd.s32 %s201, 1
      %s203 = scalar_select %p200, %s201, %s202
      %p206 = pneg %p200
      %p207 = scmp.eq.s32.totalorder %s18, 1
      %p208 = por %p206, %p207
      %p209 = scmp.ne.s32.totalorder %s201, %s204
      %p210 = scmp.eq.s32.totalorder %s18, 0
      %p211 = por %p209, %p210
      %p212 = scmp.ne.s32.totalorder %s201, %s204
      %p213 = scmp.eq.s32.totalorder %s23, 1
      %p214 = por %p212, %p213
      %p215 = scmp.ne.s32.totalorder %s204, %s205
      %p216 = scmp.eq.s32.totalorder %s23, 0
      %p217 = por %p215, %p216
      %p218 = scmp.ne.s32.totalorder %s204, %s205
      %p219 = scmp.eq.s32.totalorder %s24, 1
      %p220 = por %p218, %p219
      %p222 = scmp.ne.s32.totalorder %s205, %s221
      %p223 = scmp.eq.s32.totalorder %s24, 0
      %p224 = por %p222, %p223
      %p225 = scmp.le.s32.totalorder 1, %s18
      %p226 = scmp.lt.s32.totalorder %s18, 3
      %p227 = pnand %p225, %p226
      %p228 = pneg %p227
      // Predicated region
      $region9: #{tpu_custom_call.1} parent=5 // pred_check
        _
      $region10: #{tpu_custom_call.1} parent=5 // pred_check_branch
        %230 = sbr.rel (%p227) target = $region12
      $region11: #{tpu_custom_call.1} parent=5 // pred_region
        %s231 = ssub.s32 %s18, 1
        // Predicated region
        $region13: #{tpu_custom_call.1} parent=11 // pred_check
          %p232 = pneg %p65
        $region14: #{tpu_custom_call.1} parent=11 // pred_check_branch
          %234 = sbr.rel (%p232) target = $region16
        $region15: #{tpu_custom_call.1} parent=11 // pred_region
          _
        $region16: #{tpu_custom_call.1} parent=11 // pred_fallthru
          _
        // Predicated region
        $region17: #{tpu_custom_call.1} parent=11 // pred_check
          %p235 = pneg %p86
        $region18: #{tpu_custom_call.1} parent=11 // pred_check_branch
          %237 = sbr.rel (%p235) target = $region20
        $region19: #{tpu_custom_call.1} parent=11 // pred_region
          _
        $region20: #{tpu_custom_call.1} parent=11 // pred_fallthru
          _
        // Predicated region
        $region21: #{tpu_custom_call.1} parent=11 // pred_check
          %p238 = pneg %p107
        $region22: #{tpu_custom_call.1} parent=11 // pred_check_branch
          %240 = sbr.rel (%p238) target = $region24
        $region23: #{tpu_custom_call.1} parent=11 // pred_region
          _
        $region24: #{tpu_custom_call.1} parent=11 // pred_fallthru
          _
        // Predicated region
        $region25: #{tpu_custom_call.1} parent=11 // pred_check
          %p241 = pneg %p128
        $region26: #{tpu_custom_call.1} parent=11 // pred_check_branch
          %243 = sbr.rel (%p241) target = $region28
        $region27: #{tpu_custom_call.1} parent=11 // pred_region
          _
        $region28: #{tpu_custom_call.1} parent=11 // pred_fallthru
          _
        // Predicated region
        $region29: #{tpu_custom_call.1} parent=11 // pred_check
          %p244 = pneg %p149
        $region30: #{tpu_custom_call.1} parent=11 // pred_check_branch
          %246 = sbr.rel (%p244) target = $region32
        $region31: #{tpu_custom_call.1} parent=11 // pred_region
          _
        $region32: #{tpu_custom_call.1} parent=11 // pred_fallthru
          _
        // Predicated region
        $region33: #{tpu_custom_call.1} parent=11 // pred_check
          %p247 = pneg %p170
        $region34: #{tpu_custom_call.1} parent=11 // pred_check_branch
          %249 = sbr.rel (%p247) target = $region36
        $region35: #{tpu_custom_call.1} parent=11 // pred_region
          _
        $region36: #{tpu_custom_call.1} parent=11 // pred_fallthru
          _
        // Predicated region
        $region37: #{tpu_custom_call.1} parent=11 // pred_check
          %p250 = pneg %p191
        $region38: #{tpu_custom_call.1} parent=11 // pred_check_branch
          %252 = sbr.rel (%p250) target = $region40
        $region39: #{tpu_custom_call.1} parent=11 // pred_region
          %s254 = ssub.s32 1024, 1024
          %255 = vsyncadd [#allocation3], %s254
          %s256 = sshll.u32 [#allocation2], 4
          %s257 = int_to_ptr.vmem [resolvable:$true] %s256
          %262 = dma.hbm_to_vmem [thread:$0]  %s7, 1024, %s257, [#allocation3], 512, 512, 32
        $region40: #{tpu_custom_call.1} parent=11 // pred_fallthru
          _
      $region12: #{tpu_custom_call.1} parent=5 // pred_fallthru
        _
      %p263 = scmp.lt.s32.totalorder %s18, 2
      // Predicated region
      $region41: #{tpu_custom_call.1} parent=5 // pred_check
        %p264 = pneg %p263
      $region42: #{tpu_custom_call.1} parent=5 // pred_check_branch
        %266 = sbr.rel (%p264) target = $region44
      $region43: #{tpu_custom_call.1} parent=5 // pred_region
        // Predicated region
        $region45: #{tpu_custom_call.1} parent=43 // pred_check
          %p267 = pneg %p38
        $region46: #{tpu_custom_call.1} parent=43 // pred_check_branch
          %269 = sbr.rel (%p267) target = $region48
        $region47: #{tpu_custom_call.1} parent=43 // pred_region
          %s270 = smul.u32 4, %s18
          %p271 = scmp.lt.s32.totalorder %s270, 7
          %s272 = scalar_select %p271, %s270, 7
          %s273 = smul.addr %s272, 8
          %s274 = scalar_lea.vmem %s0, %s273
          %s275 = smul.u32 4, %s18
        $region48: #{tpu_custom_call.1} parent=43 // pred_fallthru
          _
      $region44: #{tpu_custom_call.1} parent=5 // pred_fallthru
        _
      %p276 = scmp.le.s32.totalorder 1, %s18
      %p277 = scmp.lt.s32.totalorder %s18, 3
      %p278 = pnand %p276, %p277
      %p279 = pneg %p278
      // Predicated region
      $region49: #{tpu_custom_call.1} parent=5 // pred_check
        _
      $region50: #{tpu_custom_call.1} parent=5 // pred_check_branch
        %281 = sbr.rel (%p278) target = $region52
      $region51: #{tpu_custom_call.1} parent=5 // pred_region
        %s282 = ssub.s32 %s18, 1
        // Predicated region
        $region53: #{tpu_custom_call.1} parent=51 // pred_check
          %p283 = pneg %p191
        $region54: #{tpu_custom_call.1} parent=51 // pred_check_branch
          %285 = sbr.rel (%p283) target = $region56
        $region55: #{tpu_custom_call.1} parent=51 // pred_region
          %286 = dma.done [#allocation3], 1024
        $region56: #{tpu_custom_call.1} parent=51 // pred_fallthru
          _
        %s287 = smul.u32 4, %s23
        %p288 = scmp.lt.s32.totalorder %s287, 7
        %s289 = scalar_select %p288, %s287, 7
        %s290 = smul.addr %s289, 8
        %s291 = scalar_lea.vmem %s0, %s290
        %p292 = pneg %p44
        %p293 = pneg %p41
        %p294 = pneg %p65
        %p295 = pneg %p62
        %p296 = pneg %p86
        %p297 = pneg %p83
        %p298 = pneg %p107
        %p299 = pneg %p104
        %p300 = pneg %p128
        %p301 = pneg %p125
        %p302 = pneg %p149
        %p303 = pneg %p146
        %p304 = pneg %p170
        %p305 = pneg %p167
        %p306 = pneg %p191
        %p307 = pneg %p188
        %p308 = pneg %p217
        %p309 = pneg %p214
        %s310 = sand.u32 %s204, 1
        %s311 = scalar_lea.sflag [#allocation4], %s310
        %s312 = sand.u32 %s204, 1
        %s313 = smul.addr %s312, 32
        %s314 = scalar_lea.vmem [#allocation5], %s313
        %s315 = smul.u32 4, %s23
        %p316 = scmp.lt.s32.totalorder %s315, 7
        %s317 = scalar_select %p316, %s315, 7
        %s318 = smul.addr %s317, 8
        %s319 = scalar_lea.vmem %s0, %s318
        %s320 = smul.u32 4, %s23
        %s321 = smul.u32 4, %s23
        %v323 = vld [vmem:[%s319] sm:$0xff]
        %v324 = vld [vmem:[%s319 + $0x8] sm:$0xff]
        %v325 = vld [vmem:[%s319 + $0x10] sm:$0xff]
        %v326 = vld [vmem:[%s319 + $0x18] sm:$0xff]
        %v327 = vld [vmem:[%s1] sm:$0xf]
        %v328 = vld [vmem:[%s1 + $0x4] sm:$0xf]
        %v329 = vld [vmem:[%s1 + $0x8] sm:$0xf]
        %v330 = vpack.c.bf16 %v323, %v323
        %v331 = vpack.c.bf16 %v324, %v324
        %v332 = vpack.c.bf16 %v325, %v325
        %v333 = vpack.c.bf16 %v326, %v326
        %v334 = vld [vmem:[%s2] sm:$0xff]
        %v335 = vld [vmem:[%s2 + $0x8] sm:$0xff]
        %v336 = vld [vmem:[%s2 + $0x10] sm:$0xff]
        %338 = vset.pattern.permute.xlu0 0
        %339 = vperm.xlu0 %338, %v334
        %v340 = vpop.permute.xlu0 %339
        %343 = vset.pattern.permute.xlu0 0
        %344 = vperm.xlu0 %343, %v335
        %v345 = vpop.permute.xlu0 %344
        %348 = vset.pattern.permute.xlu0 0
        %349 = vperm.xlu0 %348, %v336
        %v350 = vpop.permute.xlu0 %349
        %v355 = vunpack.c.l.b16 %v327
        %v356 = vunpack.c.l.b16 %v328
        %v357 = vunpack.c.l.b16 %v329
        %v358 = vpack.c.b16 %v356, %v355
        %v359 = vpack.c.b16 %v357, %v357
        %vm360 = vcmask 64512
        %v362 = vsel %vm360, %v358, 0
        %v365 = vsel %vm360, %v359, 0
        %vm367 = vcmask 1043456
        %v369 = vsel %vm367, %v330, 0
        %v372 = vsel %vm367, %v331, 0
        %v375 = vsel %vm367, %v332, 0
        %v378 = vsel %vm367, %v333, 0
        %380 = vmatprep.subr.bf16.mxu0 0
        %381 = vmatpush1.bf16.msra.mxu0 0
        %382 = vmatprep.subr.bf16.mxu0 0
        %383 = vmatpush1.bf16.msra.mxu0 0
        %384 = vmatprep.subr.bf16.mxu0 0
        %385 = vmatpush1.bf16.msra.mxu0 0
        %386 = vmatprep.subr.bf16.mxu0 0
        %387 = vmatpush1.bf16.msra.mxu0 0
        %388 = vmatprep.subr.bf16.mxu0 0
        %389 = vmatpush1.bf16.msra.mxu0 0
        %390 = vmatprep.subr.bf16.mxu0 0
        %391 = vmatpush1.bf16.msra.mxu0 0
        %392 = vmatprep.subr.bf16.mxu0 0
        %393 = vmatpush1.bf16.msra.mxu0 0
        %394 = vmatprep.subr.bf16.mxu0 %v372
        %395 = vmatpush1.bf16.msra.mxu0 %v369
        %396 = vmatprep.subr.bf16.mxu0 0
        %397 = vmatpush2.bf16.msra.mxu0 0
        %398 = vmatprep.subr.bf16.mxu0 0
        %399 = vmatpush2.bf16.msra.mxu0 0
        %400 = vmatprep.subr.bf16.mxu0 0
        %401 = vmatpush2.bf16.msra.mxu0 0
        %402 = vmatprep.subr.bf16.mxu0 0
        %403 = vmatpush2.bf16.msra.mxu0 0
        %404 = vmatprep.subr.bf16.mxu0 0
        %405 = vmatpush2.bf16.msra.mxu0 0
        %406 = vmatprep.subr.bf16.mxu0 0
        %407 = vmatpush2.bf16.msra.mxu0 0
        %408 = vmatprep.subr.bf16.mxu0 0
        %409 = vmatpush2.bf16.msra.mxu0 0
        %410 = vmatprep.subr.bf16.mxu0 0
        %411 = vmatpush2.bf16.msra.mxu0 0
        %412 = vmatprep.mubr.bf16.mxu0 0
        %413 = vmatmul.mubr.bf16.gmra.mxu0 %v362
        %v414 = vpop.f32.mrf.mxu0
        %v415 = vadd.f32 %v340, %v414
        %v416 = vpop.f32.mrf.mxu0
        %v417 = vadd.f32 %v340, %v416
        %v418 = vpop.f32.mrf.mxu0
        %v419 = vadd.f32 %v345, %v418
        %v420 = vpop.f32.mrf.mxu0
        %v421 = vadd.f32 %v345, %v420
        %422 = vmatprep.mubr.bf16.mxu0 0
        %423 = vmatmul.mubr.bf16.gmra.mxu0 %v365
        %v424 = vpop.f32.mrf.mxu0
        %v425 = vadd.f32 %v350, %v424
        %v426 = vpop.f32.mrf.mxu0
        %v427 = vadd.f32 %v350, %v426
        %v428 = vpop.f32.mrf.mxu0
        %v429 = vpop.f32.mrf.mxu0
        %430 = vdwg.mxu0
        %431 = vmatprep.subr.bf16.mxu0 0
        %432 = vmatpush1.bf16.msra.mxu0 0
        %433 = vmatprep.subr.bf16.mxu0 0
        %434 = vmatpush1.bf16.msra.mxu0 0
        %435 = vmatprep.subr.bf16.mxu0 0
        %436 = vmatpush1.bf16.msra.mxu0 0
        %437 = vmatprep.subr.bf16.mxu0 0
        %438 = vmatpush1.bf16.msra.mxu0 0
        %439 = vmatprep.subr.bf16.mxu0 0
        %440 = vmatpush1.bf16.msra.mxu0 0
        %441 = vmatprep.subr.bf16.mxu0 0
        %442 = vmatpush1.bf16.msra.mxu0 0
        %443 = vmatprep.subr.bf16.mxu0 0
        %444 = vmatpush1.bf16.msra.mxu0 0
        %445 = vmatprep.subr.bf16.mxu0 %v378
        %446 = vmatpush1.bf16.msra.mxu0 %v375
        %447 = vmatprep.subr.bf16.mxu0 0
        %448 = vmatpush2.bf16.msra.mxu0 0
        %449 = vmatprep.subr.bf16.mxu0 0
        %450 = vmatpush2.bf16.msra.mxu0 0
        %451 = vmatprep.subr.bf16.mxu0 0
        %452 = vmatpush2.bf16.msra.mxu0 0
        %453 = vmatprep.subr.bf16.mxu0 0
        %454 = vmatpush2.bf16.msra.mxu0 0
        %455 = vmatprep.subr.bf16.mxu0 0
        %456 = vmatpush2.bf16.msra.mxu0 0
        %457 = vmatprep.subr.bf16.mxu0 0
        %458 = vmatpush2.bf16.msra.mxu0 0
        %459 = vmatprep.subr.bf16.mxu0 0
        %460 = vmatpush2.bf16.msra.mxu0 0
        %461 = vmatprep.subr.bf16.mxu0 0
        %462 = vmatpush2.bf16.msra.mxu0 0
        %463 = vmatprep.mubr.bf16.mxu0 0
        %464 = vmatmul.mubr.bf16.gmra.mxu0 %v362
        %v465 = vpop.f32.mrf.mxu0
        %v466 = vadd.f32 %v340, %v465
        %v467 = vpop.f32.mrf.mxu0
        %v468 = vadd.f32 %v340, %v467
        %v469 = vpop.f32.mrf.mxu0
        %v470 = vadd.f32 %v345, %v469
        %v471 = vpop.f32.mrf.mxu0
        %v472 = vadd.f32 %v345, %v471
        %473 = vmatprep.mubr.bf16.mxu0 0
        %474 = vmatmul.mubr.bf16.gmra.mxu0 %v365
        %v475 = vpop.f32.mrf.mxu0
        %v476 = vadd.f32 %v350, %v475
        %v477 = vpop.f32.mrf.mxu0
        %v478 = vadd.f32 %v350, %v477
        %v479 = vpop.f32.mrf.mxu0
        %v480 = vpop.f32.mrf.mxu0
        %481 = vdwg.mxu0
        %v482 = vmax.f32 %v415, 0.0
        %v483 = vmax.f32 %v417, 0.0
        %v484 = vmax.f32 %v466, 0.0
        %v485 = vmax.f32 %v468, 0.0
        %v486 = vmax.f32 %v419, 0.0
        %v487 = vmax.f32 %v421, 0.0
        %v488 = vmax.f32 %v470, 0.0
        %v489 = vmax.f32 %v472, 0.0
        %v490 = vmax.f32 %v425, 0.0
        %v491 = vmax.f32 %v427, 0.0
        %v492 = vmax.f32 %v476, 0.0
        %v493 = vmax.f32 %v478, 0.0
        %v494 = vld [vmem:[%s3] sm:$0xff]
        %v495 = vld [vmem:[%s3 + $0x8] sm:$0xff]
        %v496 = vld [vmem:[%s3 + $0x10] sm:$0xff]
        %v497 = vld [vmem:[#allocation2] sm:$0xff]
        %v498 = vld [vmem:[#allocation2 + $0x8] sm:$0xff]
        %v499 = vld [vmem:[#allocation2 + $0x10] sm:$0xff]
        %v500 = vld [vmem:[#allocation2 + $0x18] sm:$0xff]
        %v501 = vld [vmem:[#allocation2 + $0x20] sm:$0x1]
        %v502 = vld [vmem:[#allocation2 + $0x28] sm:$0x1]
        %v503 = vld [vmem:[#allocation2 + $0x30] sm:$0x1]
        %v504 = vld [vmem:[#allocation2 + $0x38] sm:$0x1]
        %505 = vrot.lane.b32.xlu0 %v482, 17
        %v506 = vpop.permute.xlu0 %505
        %507 = vrot.lane.b32.xlu0 %v486, 17
        %v508 = vpop.permute.xlu0 %507
        %509 = vrot.lane.b32.xlu0 %v490, 17
        %v510 = vpop.permute.xlu0 %509
        %511 = vrot.lane.b32.xlu0 %v483, 17
        %v512 = vpop.permute.xlu0 %511
        %513 = vrot.lane.b32.xlu0 %v487, 17
        %v514 = vpop.permute.xlu0 %513
        %515 = vrot.lane.b32.xlu0 %v491, 17
        %v516 = vpop.permute.xlu0 %515
        %517 = vrot.lane.b32.xlu0 %v484, 17
        %v518 = vpop.permute.xlu0 %517
        %519 = vrot.lane.b32.xlu0 %v488, 17
        %v520 = vpop.permute.xlu0 %519
        %521 = vrot.lane.b32.xlu0 %v492, 17
        %v522 = vpop.permute.xlu0 %521
        %523 = vrot.lane.b32.xlu0 %v485, 17
        %v524 = vpop.permute.xlu0 %523
        %525 = vrot.lane.b32.xlu0 %v489, 17
        %v526 = vpop.permute.xlu0 %525
        %527 = vrot.lane.b32.xlu0 %v493, 17
        %v528 = vpop.permute.xlu0 %527
        %v529 = vlaneseq
        %v530 = vand.u32 %v529, 127
        %vm531 = vcmp.lt.s32.totalorder %v530, 17
        %v532 = vsel %vm531, %v518, %v524
        %v533 = vsel %vm531, %v520, %v526
        %v534 = vsel %vm531, %v522, %v528
        %v535 = vsel %vm531, %v512, %v518
        %v536 = vsel %vm531, %v514, %v520
        %v537 = vsel %vm531, %v516, %v522
        %v538 = vsel %vm531, %v506, %v512
        %v539 = vsel %vm531, %v508, %v514
        %v540 = vsel %vm531, %v510, %v516
        %v541 = vsel %vm531, %v524, %v506
        %v542 = vsel %vm531, %v526, %v508
        %v543 = vsel %vm531, %v528, %v510
        %545 = vset.pattern.permute.xlu0 0
        %546 = vperm.xlu0 %545, %v494
        %v547 = vpop.permute.xlu0 %546
        %550 = vset.pattern.permute.xlu0 0
        %551 = vperm.xlu0 %550, %v495
        %v552 = vpop.permute.xlu0 %551
        %555 = vset.pattern.permute.xlu0 0
        %556 = vperm.xlu0 %555, %v496
        %v557 = vpop.permute.xlu0 %556
        %v559 = vmul.f32 %v541, %v547
        %v560 = vmul.f32 %v538, %v547
        %v561 = vmul.f32 %v535, %v547
        %v562 = vmul.f32 %v532, %v547
        %v563 = vmul.f32 %v542, %v552
        %v564 = vmul.f32 %v539, %v552
        %v565 = vmul.f32 %v536, %v552
        %v566 = vmul.f32 %v533, %v552
        %v567 = vmul.f32 %v543, %v557
        %v568 = vmul.f32 %v540, %v557
        %v569 = vmul.f32 %v537, %v557
        %v570 = vmul.f32 %v534, %v557
        %v571 = vlaneseq
        %v572 = vshrl.u32 %v571, 7
        %v573 = vsub.s32 0, %v572
        %v574 = vrot.slane %v497, %v573
        %v575 = vlaneseq
        %v576 = vshrl.u32 %v575, 7
        %v577 = vsub.s32 0, %v576
        %v578 = vrot.slane %v498, %v577
        %v579 = vlaneseq
        %v580 = vshrl.u32 %v579, 7
        %v581 = vsub.s32 0, %v580
        %v582 = vrot.slane %v499, %v581
        %v583 = vlaneseq
        %v584 = vshrl.u32 %v583, 7
        %v585 = vsub.s32 0, %v584
        %v586 = vrot.slane %v500, %v585
        %v587 = vmul.f32 %v559, %v574
        %v588 = vmul.f32 %v560, %v578
        %v589 = vmul.f32 %v561, %v582
        %v590 = vmul.f32 %v562, %v586
        %v591 = vmul.f32 %v563, %v574
        %v592 = vmul.f32 %v564, %v578
        %v593 = vmul.f32 %v565, %v582
        %v594 = vmul.f32 %v566, %v586
        %v595 = vmul.f32 %v567, %v574
        %v596 = vmul.f32 %v568, %v578
        %v597 = vmul.f32 %v569, %v582
        %v598 = vmul.f32 %v570, %v586
        %v599 = vadd.f32 %v587, 0.0
        %v600 = vadd.f32 %v588, 0.0
        %v601 = vadd.f32 %v589, 0.0
        %v602 = vadd.f32 %v590, 0.0
        %v603 = vadd.f32 %v591, 0.0
        %v604 = vadd.f32 %v592, 0.0
        %v605 = vadd.f32 %v593, 0.0
        %v606 = vadd.f32 %v594, 0.0
        %v607 = vadd.f32 %v595, 0.0
        %v608 = vadd.f32 %v596, 0.0
        %v609 = vadd.f32 %v597, 0.0
        %v610 = vadd.f32 %v598, 0.0
        %611 = vrot.lane.b32.xlu0 %v482, 16
        %v612 = vpop.permute.xlu0 %611
        %613 = vrot.lane.b32.xlu0 %v486, 16
        %v614 = vpop.permute.xlu0 %613
        %615 = vrot.lane.b32.xlu0 %v490, 16
        %v616 = vpop.permute.xlu0 %615
        %617 = vrot.lane.b32.xlu0 %v483, 16
        %v618 = vpop.permute.xlu0 %617
        %619 = vrot.lane.b32.xlu0 %v487, 16
        %v620 = vpop.permute.xlu0 %619
        %621 = vrot.lane.b32.xlu0 %v491, 16
        %v622 = vpop.permute.xlu0 %621
        %623 = vrot.lane.b32.xlu0 %v484, 16
        %v624 = vpop.permute.xlu0 %623
        %625 = vrot.lane.b32.xlu0 %v488, 16
        %v626 = vpop.permute.xlu0 %625
        %627 = vrot.lane.b32.xlu0 %v492, 16
        %v628 = vpop.permute.xlu0 %627
        %629 = vrot.lane.b32.xlu0 %v485, 16
        %v630 = vpop.permute.xlu0 %629
        %631 = vrot.lane.b32.xlu0 %v489, 16
        %v632 = vpop.permute.xlu0 %631
        %633 = vrot.lane.b32.xlu0 %v493, 16
        %v634 = vpop.permute.xlu0 %633
        %vm635 = vcmp.lt.s32.totalorder %v530, 16
        %v636 = vsel %vm635, %v624, %v630
        %v637 = vsel %vm635, %v626, %v632
        %v638 = vsel %vm635, %v628, %v634
        %v639 = vsel %vm635, %v618, %v624
        %v640 = vsel %vm635, %v620, %v626
        %v641 = vsel %vm635, %v622, %v628
        %v642 = vsel %vm635, %v612, %v618
        %v643 = vsel %vm635, %v614, %v620
        %v644 = vsel %vm635, %v616, %v622
        %v645 = vsel %vm635, %v630, %v612
        %v646 = vsel %vm635, %v632, %v614
        %v647 = vsel %vm635, %v634, %v616
        %648 = vset.pattern.permute.xlu0 1
        %649 = vperm.xlu0 %648, %v494
        %v650 = vpop.permute.xlu0 %649
        %652 = vset.pattern.permute.xlu0 1
        %653 = vperm.xlu0 %652, %v495
        %v654 = vpop.permute.xlu0 %653
        %656 = vset.pattern.permute.xlu0 1
        %657 = vperm.xlu0 %656, %v496
        %v658 = vpop.permute.xlu0 %657
        %v660 = vmul.f32 %v645, %v650
        %v661 = vmul.f32 %v642, %v650
        %v662 = vmul.f32 %v639, %v650
        %v663 = vmul.f32 %v636, %v650
        %v664 = vmul.f32 %v646, %v654
        %v665 = vmul.f32 %v643, %v654
        %v666 = vmul.f32 %v640, %v654
        %v667 = vmul.f32 %v637, %v654
        %v668 = vmul.f32 %v647, %v658
        %v669 = vmul.f32 %v644, %v658
        %v670 = vmul.f32 %v641, %v658
        %v671 = vmul.f32 %v638, %v658
        %v672 = vlaneseq
        %v673 = vshrl.u32 %v672, 7
        %v674 = vsub.s32 1, %v673
        %v675 = vrot.slane %v497, %v674
        %v676 = vlaneseq
        %v677 = vshrl.u32 %v676, 7
        %v678 = vsub.s32 1, %v677
        %v679 = vrot.slane %v498, %v678
        %v680 = vlaneseq
        %v681 = vshrl.u32 %v680, 7
        %v682 = vsub.s32 1, %v681
        %v683 = vrot.slane %v499, %v682
        %v684 = vlaneseq
        %v685 = vshrl.u32 %v684, 7
        %v686 = vsub.s32 1, %v685
        %v687 = vrot.slane %v500, %v686
        %v688 = vmul.f32 %v660, %v675
        %v689 = vmul.f32 %v661, %v679
        %v690 = vmul.f32 %v662, %v683
        %v691 = vmul.f32 %v663, %v687
        %v692 = vmul.f32 %v664, %v675
        %v693 = vmul.f32 %v665, %v679
        %v694 = vmul.f32 %v666, %v683
        %v695 = vmul.f32 %v667, %v687
        %v696 = vmul.f32 %v668, %v675
        %v697 = vmul.f32 %v669, %v679
        %v698 = vmul.f32 %v670, %v683
        %v699 = vmul.f32 %v671, %v687
        %v700 = vadd.f32 %v599, %v688
        %v701 = vadd.f32 %v600, %v689
        %v702 = vadd.f32 %v601, %v690
        %v703 = vadd.f32 %v602, %v691
        %v704 = vadd.f32 %v603, %v692
        %v705 = vadd.f32 %v604, %v693
        %v706 = vadd.f32 %v605, %v694
        %v707 = vadd.f32 %v606, %v695
        %v708 = vadd.f32 %v607, %v696
        %v709 = vadd.f32 %v608, %v697
        %v710 = vadd.f32 %v609, %v698
        %v711 = vadd.f32 %v610, %v699
        %712 = vrot.lane.b32.xlu0 %v482, 15
        %v713 = vpop.permute.xlu0 %712
        %714 = vrot.lane.b32.xlu0 %v486, 15
        %v715 = vpop.permute.xlu0 %714
        %716 = vrot.lane.b32.xlu0 %v490, 15
        %v717 = vpop.permute.xlu0 %716
        %718 = vrot.lane.b32.xlu0 %v483, 15
        %v719 = vpop.permute.xlu0 %718
        %720 = vrot.lane.b32.xlu0 %v487, 15
        %v721 = vpop.permute.xlu0 %720
        %722 = vrot.lane.b32.xlu0 %v491, 15
        %v723 = vpop.permute.xlu0 %722
        %724 = vrot.lane.b32.xlu0 %v484, 15
        %v725 = vpop.permute.xlu0 %724
        %726 = vrot.lane.b32.xlu0 %v488, 15
        %v727 = vpop.permute.xlu0 %726
        %728 = vrot.lane.b32.xlu0 %v492, 15
        %v729 = vpop.permute.xlu0 %728
        %730 = vrot.lane.b32.xlu0 %v485, 15
        %v731 = vpop.permute.xlu0 %730
        %732 = vrot.lane.b32.xlu0 %v489, 15
        %v733 = vpop.permute.xlu0 %732
        %734 = vrot.lane.b32.xlu0 %v493, 15
        %v735 = vpop.permute.xlu0 %734
        %vm736 = vcmp.lt.s32.totalorder %v530, 15
        %v737 = vsel %vm736, %v725, %v731
        %v738 = vsel %vm736, %v727, %v733
        %v739 = vsel %vm736, %v729, %v735
        %v740 = vsel %vm736, %v719, %v725
        %v741 = vsel %vm736, %v721, %v727
        %v742 = vsel %vm736, %v723, %v729
        %v743 = vsel %vm736, %v713, %v719
        %v744 = vsel %vm736, %v715, %v721
        %v745 = vsel %vm736, %v717, %v723
        %v746 = vsel %vm736, %v731, %v713
        %v747 = vsel %vm736, %v733, %v715
        %v748 = vsel %vm736, %v735, %v717
        %749 = vset.pattern.permute.xlu0 2
        %750 = vperm.xlu0 %749, %v494
        %v751 = vpop.permute.xlu0 %750
        %753 = vset.pattern.permute.xlu0 2
        %754 = vperm.xlu0 %753, %v495
        %v755 = vpop.permute.xlu0 %754
        %757 = vset.pattern.permute.xlu0 2
        %758 = vperm.xlu0 %757, %v496
        %v759 = vpop.permute.xlu0 %758
        %v761 = vmul.f32 %v746, %v751
        %v762 = vmul.f32 %v743, %v751
        %v763 = vmul.f32 %v740, %v751
        %v764 = vmul.f32 %v737, %v751
        %v765 = vmul.f32 %v747, %v755
        %v766 = vmul.f32 %v744, %v755
        %v767 = vmul.f32 %v741, %v755
        %v768 = vmul.f32 %v738, %v755
        %v769 = vmul.f32 %v748, %v759
        %v770 = vmul.f32 %v745, %v759
        %v771 = vmul.f32 %v742, %v759
        %v772 = vmul.f32 %v739, %v759
        %v773 = vlaneseq
        %v774 = vshrl.u32 %v773, 7
        %v775 = vsub.s32 2, %v774
        %v776 = vrot.slane %v497, %v775
        %v777 = vlaneseq
        %v778 = vshrl.u32 %v777, 7
        %v779 = vsub.s32 2, %v778
        %v780 = vrot.slane %v498, %v779
        %v781 = vlaneseq
        %v782 = vshrl.u32 %v781, 7
        %v783 = vsub.s32 2, %v782
        %v784 = vrot.slane %v499, %v783
        %v785 = vlaneseq
        %v786 = vshrl.u32 %v785, 7
        %v787 = vsub.s32 2, %v786
        %v788 = vrot.slane %v500, %v787
        %v789 = vmul.f32 %v761, %v776
        %v790 = vmul.f32 %v762, %v780
        %v791 = vmul.f32 %v763, %v784
        %v792 = vmul.f32 %v764, %v788
        %v793 = vmul.f32 %v765, %v776
        %v794 = vmul.f32 %v766, %v780
        %v795 = vmul.f32 %v767, %v784
        %v796 = vmul.f32 %v768, %v788
        %v797 = vmul.f32 %v769, %v776
        %v798 = vmul.f32 %v770, %v780
        %v799 = vmul.f32 %v771, %v784
        %v800 = vmul.f32 %v772, %v788
        %v801 = vadd.f32 %v700, %v789
        %v802 = vadd.f32 %v701, %v790
        %v803 = vadd.f32 %v702, %v791
        %v804 = vadd.f32 %v703, %v792
        %v805 = vadd.f32 %v704, %v793
        %v806 = vadd.f32 %v705, %v794
        %v807 = vadd.f32 %v706, %v795
        %v808 = vadd.f32 %v707, %v796
        %v809 = vadd.f32 %v708, %v797
        %v810 = vadd.f32 %v709, %v798
        %v811 = vadd.f32 %v710, %v799
        %v812 = vadd.f32 %v711, %v800
        %813 = vrot.lane.b32.xlu0 %v482, 1
        %v814 = vpop.permute.xlu0 %813
        %815 = vrot.lane.b32.xlu0 %v486, 1
        %v816 = vpop.permute.xlu0 %815
        %817 = vrot.lane.b32.xlu0 %v490, 1
        %v818 = vpop.permute.xlu0 %817
        %819 = vrot.lane.b32.xlu0 %v483, 1
        %v820 = vpop.permute.xlu0 %819
        %821 = vrot.lane.b32.xlu0 %v487, 1
        %v822 = vpop.permute.xlu0 %821
        %823 = vrot.lane.b32.xlu0 %v491, 1
        %v824 = vpop.permute.xlu0 %823
        %825 = vrot.lane.b32.xlu0 %v484, 1
        %v826 = vpop.permute.xlu0 %825
        %827 = vrot.lane.b32.xlu0 %v488, 1
        %v828 = vpop.permute.xlu0 %827
        %829 = vrot.lane.b32.xlu0 %v492, 1
        %v830 = vpop.permute.xlu0 %829
        %831 = vrot.lane.b32.xlu0 %v485, 1
        %v832 = vpop.permute.xlu0 %831
        %833 = vrot.lane.b32.xlu0 %v489, 1
        %v834 = vpop.permute.xlu0 %833
        %835 = vrot.lane.b32.xlu0 %v493, 1
        %v836 = vpop.permute.xlu0 %835
        %vm837 = vcmp.lt.s32.totalorder %v530, 1
        %v838 = vsel %vm837, %v826, %v832
        %v839 = vsel %vm837, %v828, %v834
        %v840 = vsel %vm837, %v830, %v836
        %v841 = vsel %vm837, %v820, %v826
        %v842 = vsel %vm837, %v822, %v828
        %v843 = vsel %vm837, %v824, %v830
        %v844 = vsel %vm837, %v814, %v820
        %v845 = vsel %vm837, %v816, %v822
        %v846 = vsel %vm837, %v818, %v824
        %v847 = vsel %vm837, %v832, %v814
        %v848 = vsel %vm837, %v834, %v816
        %v849 = vsel %vm837, %v836, %v818
        %850 = vset.pattern.permute.xlu0 3
        %851 = vperm.xlu0 %850, %v494
        %v852 = vpop.permute.xlu0 %851
        %854 = vset.pattern.permute.xlu0 3
        %855 = vperm.xlu0 %854, %v495
        %v856 = vpop.permute.xlu0 %855
        %858 = vset.pattern.permute.xlu0 3
        %859 = vperm.xlu0 %858, %v496
        %v860 = vpop.permute.xlu0 %859
        %v862 = vmul.f32 %v847, %v852
        %v863 = vmul.f32 %v844, %v852
        %v864 = vmul.f32 %v841, %v852
        %v865 = vmul.f32 %v838, %v852
        %v866 = vmul.f32 %v848, %v856
        %v867 = vmul.f32 %v845, %v856
        %v868 = vmul.f32 %v842, %v856
        %v869 = vmul.f32 %v839, %v856
        %v870 = vmul.f32 %v849, %v860
        %v871 = vmul.f32 %v846, %v860
        %v872 = vmul.f32 %v843, %v860
        %v873 = vmul.f32 %v840, %v860
        %v874 = vlaneseq
        %v875 = vshrl.u32 %v874, 7
        %v876 = vsub.s32 3, %v875
        %v877 = vrot.slane %v497, %v876
        %v878 = vlaneseq
        %v879 = vshrl.u32 %v878, 7
        %v880 = vsub.s32 3, %v879
        %v881 = vrot.slane %v498, %v880
        %v882 = vlaneseq
        %v883 = vshrl.u32 %v882, 7
        %v884 = vsub.s32 3, %v883
        %v885 = vrot.slane %v499, %v884
        %v886 = vlaneseq
        %v887 = vshrl.u32 %v886, 7
        %v888 = vsub.s32 3, %v887
        %v889 = vrot.slane %v500, %v888
        %v890 = vmul.f32 %v862, %v877
        %v891 = vmul.f32 %v863, %v881
        %v892 = vmul.f32 %v864, %v885
        %v893 = vmul.f32 %v865, %v889
        %v894 = vmul.f32 %v866, %v877
        %v895 = vmul.f32 %v867, %v881
        %v896 = vmul.f32 %v868, %v885
        %v897 = vmul.f32 %v869, %v889
        %v898 = vmul.f32 %v870, %v877
        %v899 = vmul.f32 %v871, %v881
        %v900 = vmul.f32 %v872, %v885
        %v901 = vmul.f32 %v873, %v889
        %v902 = vadd.f32 %v801, %v890
        %v903 = vadd.f32 %v802, %v891
        %v904 = vadd.f32 %v803, %v892
        %v905 = vadd.f32 %v804, %v893
        %v906 = vadd.f32 %v805, %v894
        %v907 = vadd.f32 %v806, %v895
        %v908 = vadd.f32 %v807, %v896
        %v909 = vadd.f32 %v808, %v897
        %v910 = vadd.f32 %v809, %v898
        %v911 = vadd.f32 %v810, %v899
        %v912 = vadd.f32 %v811, %v900
        %v913 = vadd.f32 %v812, %v901
        %914 = vset.pattern.permute.xlu0 4
        %915 = vperm.xlu0 %914, %v494
        %v916 = vpop.permute.xlu0 %915
        %918 = vset.pattern.permute.xlu0 4
        %919 = vperm.xlu0 %918, %v495
        %v920 = vpop.permute.xlu0 %919
        %922 = vset.pattern.permute.xlu0 4
        %923 = vperm.xlu0 %922, %v496
        %v924 = vpop.permute.xlu0 %923
        %v926 = vmul.f32 %v482, %v916
        %v927 = vmul.f32 %v483, %v916
        %v928 = vmul.f32 %v484, %v916
        %v929 = vmul.f32 %v485, %v916
        %v930 = vmul.f32 %v486, %v920
        %v931 = vmul.f32 %v487, %v920
        %v932 = vmul.f32 %v488, %v920
        %v933 = vmul.f32 %v489, %v920
        %v934 = vmul.f32 %v490, %v924
        %v935 = vmul.f32 %v491, %v924
        %v936 = vmul.f32 %v492, %v924
        %v937 = vmul.f32 %v493, %v924
        %v938 = vadd.f32 %v902, %v926
        %v939 = vadd.f32 %v903, %v927
        %v940 = vadd.f32 %v904, %v928
        %v941 = vadd.f32 %v905, %v929
        %v942 = vadd.f32 %v906, %v930
        %v943 = vadd.f32 %v907, %v931
        %v944 = vadd.f32 %v908, %v932
        %v945 = vadd.f32 %v909, %v933
        %v946 = vadd.f32 %v910, %v934
        %v947 = vadd.f32 %v911, %v935
        %v948 = vadd.f32 %v912, %v936
        %v949 = vadd.f32 %v913, %v937
        %950 = vrot.lane.b32.xlu0 %v482, 127
        %v951 = vpop.permute.xlu0 %950
        %952 = vrot.lane.b32.xlu0 %v486, 127
        %v953 = vpop.permute.xlu0 %952
        %954 = vrot.lane.b32.xlu0 %v490, 127
        %v955 = vpop.permute.xlu0 %954
        %956 = vrot.lane.b32.xlu0 %v483, 127
        %v957 = vpop.permute.xlu0 %956
        %958 = vrot.lane.b32.xlu0 %v487, 127
        %v959 = vpop.permute.xlu0 %958
        %960 = vrot.lane.b32.xlu0 %v491, 127
        %v961 = vpop.permute.xlu0 %960
        %962 = vrot.lane.b32.xlu0 %v484, 127
        %v963 = vpop.permute.xlu0 %962
        %964 = vrot.lane.b32.xlu0 %v488, 127
        %v965 = vpop.permute.xlu0 %964
        %966 = vrot.lane.b32.xlu0 %v492, 127
        %v967 = vpop.permute.xlu0 %966
        %968 = vrot.lane.b32.xlu0 %v485, 127
        %v969 = vpop.permute.xlu0 %968
        %970 = vrot.lane.b32.xlu0 %v489, 127
        %v971 = vpop.permute.xlu0 %970
        %972 = vrot.lane.b32.xlu0 %v493, 127
        %v973 = vpop.permute.xlu0 %972
        %vm974 = vcmp.lt.s32.totalorder %v530, 127
        %v975 = vsel %vm974, %v963, %v969
        %v976 = vsel %vm974, %v965, %v971
        %v977 = vsel %vm974, %v967, %v973
        %v978 = vsel %vm974, %v957, %v963
        %v979 = vsel %vm974, %v959, %v965
        %v980 = vsel %vm974, %v961, %v967
        %v981 = vsel %vm974, %v951, %v957
        %v982 = vsel %vm974, %v953, %v959
        %v983 = vsel %vm974, %v955, %v961
        %v984 = vsel %vm974, %v969, %v951
        %v985 = vsel %vm974, %v971, %v953
        %v986 = vsel %vm974, %v973, %v955
        %987 = vset.pattern.permute.xlu0 5
        %988 = vperm.xlu0 %987, %v494
        %v989 = vpop.permute.xlu0 %988
        %991 = vset.pattern.permute.xlu0 5
        %992 = vperm.xlu0 %991, %v495
        %v993 = vpop.permute.xlu0 %992
        %995 = vset.pattern.permute.xlu0 5
        %996 = vperm.xlu0 %995, %v496
        %v997 = vpop.permute.xlu0 %996
        %v999 = vmul.f32 %v981, %v989
        %v1000 = vmul.f32 %v978, %v989
        %v1001 = vmul.f32 %v975, %v989
        %v1002 = vmul.f32 %v984, %v989
        %v1003 = vmul.f32 %v982, %v993
        %v1004 = vmul.f32 %v979, %v993
        %v1005 = vmul.f32 %v976, %v993
        %v1006 = vmul.f32 %v985, %v993
        %v1007 = vmul.f32 %v983, %v997
        %v1008 = vmul.f32 %v980, %v997
        %v1009 = vmul.f32 %v977, %v997
        %v1010 = vmul.f32 %v986, %v997
        %v1011 = vlaneseq
        %v1012 = vshrl.u32 %v1011, 7
        %v1013 = vsub.s32 5, %v1012
        %v1014 = vrot.slane %v497, %v1013
        %v1015 = vlaneseq
        %v1016 = vshrl.u32 %v1015, 7
        %v1017 = vsub.s32 5, %v1016
        %v1018 = vrot.slane %v498, %v1017
        %v1019 = vlaneseq
        %v1020 = vshrl.u32 %v1019, 7
        %v1021 = vsub.s32 5, %v1020
        %v1022 = vrot.slane %v499, %v1021
        %v1023 = vlaneseq
        %v1024 = vshrl.u32 %v1023, 7
        %v1025 = vsub.s32 5, %v1024
        %v1026 = vrot.slane %v500, %v1025
        %v1027 = vmul.f32 %v999, %v1014
        %v1028 = vmul.f32 %v1000, %v1018
        %v1029 = vmul.f32 %v1001, %v1022
        %v1030 = vmul.f32 %v1002, %v1026
        %v1031 = vmul.f32 %v1003, %v1014
        %v1032 = vmul.f32 %v1004, %v1018
        %v1033 = vmul.f32 %v1005, %v1022
        %v1034 = vmul.f32 %v1006, %v1026
        %v1035 = vmul.f32 %v1007, %v1014
        %v1036 = vmul.f32 %v1008, %v1018
        %v1037 = vmul.f32 %v1009, %v1022
        %v1038 = vmul.f32 %v1010, %v1026
        %v1039 = vadd.f32 %v938, %v1027
        %v1040 = vadd.f32 %v939, %v1028
        %v1041 = vadd.f32 %v940, %v1029
        %v1042 = vadd.f32 %v941, %v1030
        %v1043 = vadd.f32 %v942, %v1031
        %v1044 = vadd.f32 %v943, %v1032
        %v1045 = vadd.f32 %v944, %v1033
        %v1046 = vadd.f32 %v945, %v1034
        %v1047 = vadd.f32 %v946, %v1035
        %v1048 = vadd.f32 %v947, %v1036
        %v1049 = vadd.f32 %v948, %v1037
        %v1050 = vadd.f32 %v949, %v1038
        %1051 = vrot.lane.b32.xlu0 %v482, 113
        %v1052 = vpop.permute.xlu0 %1051
        %1053 = vrot.lane.b32.xlu0 %v486, 113
        %v1054 = vpop.permute.xlu0 %1053
        %1055 = vrot.lane.b32.xlu0 %v490, 113
        %v1056 = vpop.permute.xlu0 %1055
        %1057 = vrot.lane.b32.xlu0 %v483, 113
        %v1058 = vpop.permute.xlu0 %1057
        %1059 = vrot.lane.b32.xlu0 %v487, 113
        %v1060 = vpop.permute.xlu0 %1059
        %1061 = vrot.lane.b32.xlu0 %v491, 113
        %v1062 = vpop.permute.xlu0 %1061
        %1063 = vrot.lane.b32.xlu0 %v484, 113
        %v1064 = vpop.permute.xlu0 %1063
        %1065 = vrot.lane.b32.xlu0 %v488, 113
        %v1066 = vpop.permute.xlu0 %1065
        %1067 = vrot.lane.b32.xlu0 %v492, 113
        %v1068 = vpop.permute.xlu0 %1067
        %1069 = vrot.lane.b32.xlu0 %v485, 113
        %v1070 = vpop.permute.xlu0 %1069
        %1071 = vrot.lane.b32.xlu0 %v489, 113
        %v1072 = vpop.permute.xlu0 %1071
        %1073 = vrot.lane.b32.xlu0 %v493, 113
        %v1074 = vpop.permute.xlu0 %1073
        %vm1075 = vcmp.lt.s32.totalorder %v530, 113
        %v1076 = vsel %vm1075, %v1064, %v1070
        %v1077 = vsel %vm1075, %v1066, %v1072
        %v1078 = vsel %vm1075, %v1068, %v1074
        %v1079 = vsel %vm1075, %v1058, %v1064
        %v1080 = vsel %vm1075, %v1060, %v1066
        %v1081 = vsel %vm1075, %v1062, %v1068
        %v1082 = vsel %vm1075, %v1052, %v1058
        %v1083 = vsel %vm1075, %v1054, %v1060
        %v1084 = vsel %vm1075, %v1056, %v1062
        %v1085 = vsel %vm1075, %v1070, %v1052
        %v1086 = vsel %vm1075, %v1072, %v1054
        %v1087 = vsel %vm1075, %v1074, %v1056
        %1088 = vset.pattern.permute.xlu0 6
        %1089 = vperm.xlu0 %1088, %v494
        %v1090 = vpop.permute.xlu0 %1089
        %1092 = vset.pattern.permute.xlu0 6
        %1093 = vperm.xlu0 %1092, %v495
        %v1094 = vpop.permute.xlu0 %1093
        %1096 = vset.pattern.permute.xlu0 6
        %1097 = vperm.xlu0 %1096, %v496
        %v1098 = vpop.permute.xlu0 %1097
        %v1100 = vmul.f32 %v1082, %v1090
        %v1101 = vmul.f32 %v1079, %v1090
        %v1102 = vmul.f32 %v1076, %v1090
        %v1103 = vmul.f32 %v1085, %v1090
        %v1104 = vmul.f32 %v1083, %v1094
        %v1105 = vmul.f32 %v1080, %v1094
        %v1106 = vmul.f32 %v1077, %v1094
        %v1107 = vmul.f32 %v1086, %v1094
        %v1108 = vmul.f32 %v1084, %v1098
        %v1109 = vmul.f32 %v1081, %v1098
        %v1110 = vmul.f32 %v1078, %v1098
        %v1111 = vmul.f32 %v1087, %v1098
        %v1112 = vlaneseq
        %v1113 = vshrl.u32 %v1112, 7
        %v1114 = vsub.s32 6, %v1113
        %v1115 = vrot.slane %v497, %v1114
        %v1116 = vlaneseq
        %v1117 = vshrl.u32 %v1116, 7
        %v1118 = vsub.s32 6, %v1117
        %v1119 = vrot.slane %v498, %v1118
        %v1120 = vlaneseq
        %v1121 = vshrl.u32 %v1120, 7
        %v1122 = vsub.s32 6, %v1121
        %v1123 = vrot.slane %v499, %v1122
        %v1124 = vlaneseq
        %v1125 = vshrl.u32 %v1124, 7
        %v1126 = vsub.s32 6, %v1125
        %v1127 = vrot.slane %v500, %v1126
        %v1128 = vmul.f32 %v1100, %v1115
        %v1129 = vmul.f32 %v1101, %v1119
        %v1130 = vmul.f32 %v1102, %v1123
        %v1131 = vmul.f32 %v1103, %v1127
        %v1132 = vmul.f32 %v1104, %v1115
        %v1133 = vmul.f32 %v1105, %v1119
        %v1134 = vmul.f32 %v1106, %v1123
        %v1135 = vmul.f32 %v1107, %v1127
        %v1136 = vmul.f32 %v1108, %v1115
        %v1137 = vmul.f32 %v1109, %v1119
        %v1138 = vmul.f32 %v1110, %v1123
        %v1139 = vmul.f32 %v1111, %v1127
        %v1140 = vadd.f32 %v1039, %v1128
        %v1141 = vadd.f32 %v1040, %v1129
        %v1142 = vadd.f32 %v1041, %v1130
        %v1143 = vadd.f32 %v1042, %v1131
        %v1144 = vadd.f32 %v1043, %v1132
        %v1145 = vadd.f32 %v1044, %v1133
        %v1146 = vadd.f32 %v1045, %v1134
        %v1147 = vadd.f32 %v1046, %v1135
        %v1148 = vadd.f32 %v1047, %v1136
        %v1149 = vadd.f32 %v1048, %v1137
        %v1150 = vadd.f32 %v1049, %v1138
        %v1151 = vadd.f32 %v1050, %v1139
        %1152 = vrot.lane.b32.xlu0 %v482, 112
        %v1153 = vpop.permute.xlu0 %1152
        %1154 = vrot.lane.b32.xlu0 %v486, 112
        %v1155 = vpop.permute.xlu0 %1154
        %1156 = vrot.lane.b32.xlu0 %v490, 112
        %v1157 = vpop.permute.xlu0 %1156
        %1158 = vrot.lane.b32.xlu0 %v483, 112
        %v1159 = vpop.permute.xlu0 %1158
        %1160 = vrot.lane.b32.xlu0 %v487, 112
        %v1161 = vpop.permute.xlu0 %1160
        %1162 = vrot.lane.b32.xlu0 %v491, 112
        %v1163 = vpop.permute.xlu0 %1162
        %1164 = vrot.lane.b32.xlu0 %v484, 112
        %v1165 = vpop.permute.xlu0 %1164
        %1166 = vrot.lane.b32.xlu0 %v488, 112
        %v1167 = vpop.permute.xlu0 %1166
        %1168 = vrot.lane.b32.xlu0 %v492, 112
        %v1169 = vpop.permute.xlu0 %1168
        %1170 = vrot.lane.b32.xlu0 %v485, 112
        %v1171 = vpop.permute.xlu0 %1170
        %1172 = vrot.lane.b32.xlu0 %v489, 112
        %v1173 = vpop.permute.xlu0 %1172
        %1174 = vrot.lane.b32.xlu0 %v493, 112
        %v1175 = vpop.permute.xlu0 %1174
        %vm1176 = vcmp.lt.s32.totalorder %v530, 112
        %v1177 = vsel %vm1176, %v1165, %v1171
        %v1178 = vsel %vm1176, %v1167, %v1173
        %v1179 = vsel %vm1176, %v1169, %v1175
        %v1180 = vsel %vm1176, %v1159, %v1165
        %v1181 = vsel %vm1176, %v1161, %v1167
        %v1182 = vsel %vm1176, %v1163, %v1169
        %v1183 = vsel %vm1176, %v1153, %v1159
        %v1184 = vsel %vm1176, %v1155, %v1161
        %v1185 = vsel %vm1176, %v1157, %v1163
        %v1186 = vsel %vm1176, %v1171, %v1153
        %v1187 = vsel %vm1176, %v1173, %v1155
        %v1188 = vsel %vm1176, %v1175, %v1157
        %1189 = vset.pattern.permute.xlu0 7
        %1190 = vperm.xlu0 %1189, %v494
        %v1191 = vpop.permute.xlu0 %1190
        %1193 = vset.pattern.permute.xlu0 7
        %1194 = vperm.xlu0 %1193, %v495
        %v1195 = vpop.permute.xlu0 %1194
        %1197 = vset.pattern.permute.xlu0 7
        %1198 = vperm.xlu0 %1197, %v496
        %v1199 = vpop.permute.xlu0 %1198
        %v1201 = vmul.f32 %v1183, %v1191
        %v1202 = vmul.f32 %v1180, %v1191
        %v1203 = vmul.f32 %v1177, %v1191
        %v1204 = vmul.f32 %v1186, %v1191
        %v1205 = vmul.f32 %v1184, %v1195
        %v1206 = vmul.f32 %v1181, %v1195
        %v1207 = vmul.f32 %v1178, %v1195
        %v1208 = vmul.f32 %v1187, %v1195
        %v1209 = vmul.f32 %v1185, %v1199
        %v1210 = vmul.f32 %v1182, %v1199
        %v1211 = vmul.f32 %v1179, %v1199
        %v1212 = vmul.f32 %v1188, %v1199
        %v1213 = vlaneseq
        %v1214 = vshrl.u32 %v1213, 7
        %v1215 = vsub.s32 7, %v1214
        %v1216 = vrot.slane %v497, %v1215
        %v1217 = vlaneseq
        %v1218 = vshrl.u32 %v1217, 7
        %v1219 = vsub.s32 7, %v1218
        %v1220 = vrot.slane %v498, %v1219
        %v1221 = vlaneseq
        %v1222 = vshrl.u32 %v1221, 7
        %v1223 = vsub.s32 7, %v1222
        %v1224 = vrot.slane %v499, %v1223
        %v1225 = vlaneseq
        %v1226 = vshrl.u32 %v1225, 7
        %v1227 = vsub.s32 7, %v1226
        %v1228 = vrot.slane %v500, %v1227
        %v1229 = vmul.f32 %v1201, %v1216
        %v1230 = vmul.f32 %v1202, %v1220
        %v1231 = vmul.f32 %v1203, %v1224
        %v1232 = vmul.f32 %v1204, %v1228
        %v1233 = vmul.f32 %v1205, %v1216
        %v1234 = vmul.f32 %v1206, %v1220
        %v1235 = vmul.f32 %v1207, %v1224
        %v1236 = vmul.f32 %v1208, %v1228
        %v1237 = vmul.f32 %v1209, %v1216
        %v1238 = vmul.f32 %v1210, %v1220
        %v1239 = vmul.f32 %v1211, %v1224
        %v1240 = vmul.f32 %v1212, %v1228
        %v1241 = vadd.f32 %v1140, %v1229
        %v1242 = vadd.f32 %v1141, %v1230
        %v1243 = vadd.f32 %v1142, %v1231
        %v1244 = vadd.f32 %v1143, %v1232
        %v1245 = vadd.f32 %v1144, %v1233
        %v1246 = vadd.f32 %v1145, %v1234
        %v1247 = vadd.f32 %v1146, %v1235
        %v1248 = vadd.f32 %v1147, %v1236
        %v1249 = vadd.f32 %v1148, %v1237
        %v1250 = vadd.f32 %v1149, %v1238
        %v1251 = vadd.f32 %v1150, %v1239
        %v1252 = vadd.f32 %v1151, %v1240
        %1253 = vrot.lane.b32.xlu0 %v482, 111
        %v1254 = vpop.permute.xlu0 %1253
        %1255 = vrot.lane.b32.xlu0 %v486, 111
        %v1256 = vpop.permute.xlu0 %1255
        %1257 = vrot.lane.b32.xlu0 %v490, 111
        %v1258 = vpop.permute.xlu0 %1257
        %1259 = vrot.lane.b32.xlu0 %v483, 111
        %v1260 = vpop.permute.xlu0 %1259
        %1261 = vrot.lane.b32.xlu0 %v487, 111
        %v1262 = vpop.permute.xlu0 %1261
        %1263 = vrot.lane.b32.xlu0 %v491, 111
        %v1264 = vpop.permute.xlu0 %1263
        %1265 = vrot.lane.b32.xlu0 %v484, 111
        %v1266 = vpop.permute.xlu0 %1265
        %1267 = vrot.lane.b32.xlu0 %v488, 111
        %v1268 = vpop.permute.xlu0 %1267
        %1269 = vrot.lane.b32.xlu0 %v492, 111
        %v1270 = vpop.permute.xlu0 %1269
        %1271 = vrot.lane.b32.xlu0 %v485, 111
        %v1272 = vpop.permute.xlu0 %1271
        %1273 = vrot.lane.b32.xlu0 %v489, 111
        %v1274 = vpop.permute.xlu0 %1273
        %1275 = vrot.lane.b32.xlu0 %v493, 111
        %v1276 = vpop.permute.xlu0 %1275
        %vm1277 = vcmp.lt.s32.totalorder %v530, 111
        %v1278 = vsel %vm1277, %v1266, %v1272
        %v1279 = vsel %vm1277, %v1268, %v1274
        %v1280 = vsel %vm1277, %v1270, %v1276
        %v1281 = vsel %vm1277, %v1260, %v1266
        %v1282 = vsel %vm1277, %v1262, %v1268
        %v1283 = vsel %vm1277, %v1264, %v1270
        %v1284 = vsel %vm1277, %v1254, %v1260
        %v1285 = vsel %vm1277, %v1256, %v1262
        %v1286 = vsel %vm1277, %v1258, %v1264
        %v1287 = vsel %vm1277, %v1272, %v1254
        %v1288 = vsel %vm1277, %v1274, %v1256
        %v1289 = vsel %vm1277, %v1276, %v1258
        %1290 = vset.pattern.permute.xlu0 8
        %1291 = vperm.xlu0 %1290, %v494
        %v1292 = vpop.permute.xlu0 %1291
        %1294 = vset.pattern.permute.xlu0 8
        %1295 = vperm.xlu0 %1294, %v495
        %v1296 = vpop.permute.xlu0 %1295
        %1298 = vset.pattern.permute.xlu0 8
        %1299 = vperm.xlu0 %1298, %v496
        %v1300 = vpop.permute.xlu0 %1299
        %v1302 = vmul.f32 %v1284, %v1292
        %v1303 = vmul.f32 %v1281, %v1292
        %v1304 = vmul.f32 %v1278, %v1292
        %v1305 = vmul.f32 %v1287, %v1292
        %v1306 = vmul.f32 %v1285, %v1296
        %v1307 = vmul.f32 %v1282, %v1296
        %v1308 = vmul.f32 %v1279, %v1296
        %v1309 = vmul.f32 %v1288, %v1296
        %v1310 = vmul.f32 %v1286, %v1300
        %v1311 = vmul.f32 %v1283, %v1300
        %v1312 = vmul.f32 %v1280, %v1300
        %v1313 = vmul.f32 %v1289, %v1300
        %v1314 = vlaneseq
        %v1315 = vshrl.u32 %v1314, 7
        %v1316 = vsub.s32 0, %v1315
        %v1317 = vrot.slane %v501, %v1316
        %v1318 = vlaneseq
        %v1319 = vshrl.u32 %v1318, 7
        %v1320 = vsub.s32 0, %v1319
        %v1321 = vrot.slane %v502, %v1320
        %v1322 = vlaneseq
        %v1323 = vshrl.u32 %v1322, 7
        %v1324 = vsub.s32 0, %v1323
        %v1325 = vrot.slane %v503, %v1324
        %v1326 = vlaneseq
        %v1327 = vshrl.u32 %v1326, 7
        %v1328 = vsub.s32 0, %v1327
        %v1329 = vrot.slane %v504, %v1328
        %v1330 = vmul.f32 %v1302, %v1317
        %v1331 = vmul.f32 %v1303, %v1321
        %v1332 = vmul.f32 %v1304, %v1325
        %v1333 = vmul.f32 %v1305, %v1329
        %v1334 = vmul.f32 %v1306, %v1317
        %v1335 = vmul.f32 %v1307, %v1321
        %v1336 = vmul.f32 %v1308, %v1325
        %v1337 = vmul.f32 %v1309, %v1329
        %v1338 = vmul.f32 %v1310, %v1317
        %v1339 = vmul.f32 %v1311, %v1321
        %v1340 = vmul.f32 %v1312, %v1325
        %v1341 = vmul.f32 %v1313, %v1329
        %v1342 = vadd.f32 %v1241, %v1330
        %v1343 = vadd.f32 %v1242, %v1331
        %v1344 = vadd.f32 %v1243, %v1332
        %v1345 = vadd.f32 %v1244, %v1333
        %v1346 = vadd.f32 %v1245, %v1334
        %v1347 = vadd.f32 %v1246, %v1335
        %v1348 = vadd.f32 %v1247, %v1336
        %v1349 = vadd.f32 %v1248, %v1337
        %v1350 = vadd.f32 %v1249, %v1338
        %v1351 = vadd.f32 %v1250, %v1339
        %v1352 = vadd.f32 %v1251, %v1340
        %v1353 = vadd.f32 %v1252, %v1341
        %v1354 = vld [vmem:[%s4] sm:$0xff]
        %v1355 = vld [vmem:[%s4 + $0x8] sm:$0xff]
        %v1356 = vld [vmem:[%s4 + $0x10] sm:$0xff]
        %1358 = vset.pattern.permute.xlu0 0
        %1359 = vperm.xlu0 %1358, %v1354
        %v1360 = vpop.permute.xlu0 %1359
        %1363 = vset.pattern.permute.xlu0 0
        %1364 = vperm.xlu0 %1363, %v1355
        %v1365 = vpop.permute.xlu0 %1364
        %1368 = vset.pattern.permute.xlu0 0
        %1369 = vperm.xlu0 %1368, %v1356
        %v1370 = vpop.permute.xlu0 %1369
        %v1372 = vadd.f32 %v1342, %v1360
        %v1373 = vadd.f32 %v1343, %v1360
        %v1374 = vadd.f32 %v1344, %v1360
        %v1375 = vadd.f32 %v1345, %v1360
        %v1376 = vadd.f32 %v1346, %v1365
        %v1377 = vadd.f32 %v1347, %v1365
        %v1378 = vadd.f32 %v1348, %v1365
        %v1379 = vadd.f32 %v1349, %v1365
        %v1380 = vadd.f32 %v1350, %v1370
        %v1381 = vadd.f32 %v1351, %v1370
        %v1382 = vadd.f32 %v1352, %v1370
        %v1383 = vadd.f32 %v1353, %v1370
        %v1384 = vmax.f32 %v1372, 0.0
        %v1385 = vmax.f32 %v1373, 0.0
        %v1386 = vmax.f32 %v1374, 0.0
        %v1387 = vmax.f32 %v1375, 0.0
        %v1388 = vmax.f32 %v1376, 0.0
        %v1389 = vmax.f32 %v1377, 0.0
        %v1390 = vmax.f32 %v1378, 0.0
        %v1391 = vmax.f32 %v1379, 0.0
        %v1392 = vmax.f32 %v1380, 0.0
        %v1393 = vmax.f32 %v1381, 0.0
        %v1394 = vmax.f32 %v1382, 0.0
        %v1395 = vmax.f32 %v1383, 0.0
        %v1396 = vld [vmem:[%s5] sm:$0xf]
        %v1397 = vpack.c.bf16 %v1388, %v1384
        %v1398 = vpack.c.bf16 %v1389, %v1385
        %v1399 = vpack.c.bf16 %v1390, %v1386
        %v1400 = vpack.c.bf16 %v1391, %v1387
        %v1401 = vpack.c.bf16 %v1392, %v1392
        %v1402 = vpack.c.bf16 %v1393, %v1393
        %v1403 = vpack.c.bf16 %v1394, %v1394
        %v1404 = vpack.c.bf16 %v1395, %v1395
        %v1405 = vld [vmem:[%s6] sm:$0xff]
        %1407 = vset.pattern.permute.xlu0 0
        %1408 = vperm.xlu0 %1407, %v1405
        %v1409 = vpop.permute.xlu0 %1408
        %vm1411 = vcmask 195584
        %v1413 = vsel %vm1411, %v1396, 0
        %v1416 = vsel %vm367, %v1401, 0
        %v1419 = vsel %vm367, %v1402, 0
        %v1422 = vsel %vm367, %v1403, 0
        %v1425 = vsel %vm367, %v1404, 0
        %1427 = vmatprep.subr.bf16.mxu0 0
        %1428 = vmatpush1.bf16.msra.mxu0 0
        %1429 = vmatprep.subr.bf16.mxu0 0
        %1430 = vmatpush1.bf16.msra.mxu0 0
        %1431 = vmatprep.subr.bf16.mxu0 0
        %1432 = vmatpush1.bf16.msra.mxu0 0
        %1433 = vmatprep.subr.bf16.mxu0 0
        %1434 = vmatpush1.bf16.msra.mxu0 0
        %1435 = vmatprep.subr.bf16.mxu0 0
        %1436 = vmatpush1.bf16.msra.mxu0 0
        %1437 = vmatprep.subr.bf16.mxu0 0
        %1438 = vmatpush1.bf16.msra.mxu0 0
        %1439 = vmatprep.subr.bf16.mxu0 %v1419
        %1440 = vmatpush1.bf16.msra.mxu0 %v1416
        %1441 = vmatprep.subr.bf16.mxu0 %v1398
        %1442 = vmatpush1.bf16.msra.mxu0 %v1397
        %1443 = vmatprep.subr.bf16.mxu0 0
        %1444 = vmatpush2.bf16.msra.mxu0 0
        %1445 = vmatprep.subr.bf16.mxu0 0
        %1446 = vmatpush2.bf16.msra.mxu0 0
        %1447 = vmatprep.subr.bf16.mxu0 0
        %1448 = vmatpush2.bf16.msra.mxu0 0
        %1449 = vmatprep.subr.bf16.mxu0 0
        %1450 = vmatpush2.bf16.msra.mxu0 0
        %1451 = vmatprep.subr.bf16.mxu0 0
        %1452 = vmatpush2.bf16.msra.mxu0 0
        %1453 = vmatprep.subr.bf16.mxu0 0
        %1454 = vmatpush2.bf16.msra.mxu0 0
        %1455 = vmatprep.subr.bf16.mxu0 0
        %1456 = vmatpush2.bf16.msra.mxu0 0
        %1457 = vmatprep.subr.bf16.mxu0 0
        %1458 = vmatpush2.bf16.msra.mxu0 0
        %1459 = vmatprep.mubr.bf16.mxu0 0
        %1460 = vmatmul.mubr.bf16.gmra.mxu0 %v1413
        %v1461 = vpop.f32.mrf.mxu0
        %v1462 = vadd.f32 %v1409, %v1461
        %v1463 = vpop.f32.mrf.mxu0
        %v1464 = vadd.f32 %v1409, %v1463
        %v1465 = vpop.f32.mrf.mxu0
        %v1466 = vpop.f32.mrf.mxu0
        %1467 = vdwg.mxu0
        %1468 = vmatprep.subr.bf16.mxu0 0
        %1469 = vmatpush1.bf16.msra.mxu0 0
        %1470 = vmatprep.subr.bf16.mxu0 0
        %1471 = vmatpush1.bf16.msra.mxu0 0
        %1472 = vmatprep.subr.bf16.mxu0 0
        %1473 = vmatpush1.bf16.msra.mxu0 0
        %1474 = vmatprep.subr.bf16.mxu0 0
        %1475 = vmatpush1.bf16.msra.mxu0 0
        %1476 = vmatprep.subr.bf16.mxu0 0
        %1477 = vmatpush1.bf16.msra.mxu0 0
        %1478 = vmatprep.subr.bf16.mxu0 0
        %1479 = vmatpush1.bf16.msra.mxu0 0
        %1480 = vmatprep.subr.bf16.mxu0 %v1425
        %1481 = vmatpush1.bf16.msra.mxu0 %v1422
        %1482 = vmatprep.subr.bf16.mxu0 %v1400
        %1483 = vmatpush1.bf16.msra.mxu0 %v1399
        %1484 = vmatprep.subr.bf16.mxu0 0
        %1485 = vmatpush2.bf16.msra.mxu0 0
        %1486 = vmatprep.subr.bf16.mxu0 0
        %1487 = vmatpush2.bf16.msra.mxu0 0
        %1488 = vmatprep.subr.bf16.mxu0 0
        %1489 = vmatpush2.bf16.msra.mxu0 0
        %1490 = vmatprep.subr.bf16.mxu0 0
        %1491 = vmatpush2.bf16.msra.mxu0 0
        %1492 = vmatprep.subr.bf16.mxu0 0
        %1493 = vmatpush2.bf16.msra.mxu0 0
        %1494 = vmatprep.subr.bf16.mxu0 0
        %1495 = vmatpush2.bf16.msra.mxu0 0
        %1496 = vmatprep.subr.bf16.mxu0 0
        %1497 = vmatpush2.bf16.msra.mxu0 0
        %1498 = vmatprep.subr.bf16.mxu0 0
        %1499 = vmatpush2.bf16.msra.mxu0 0
        %1500 = vmatprep.mubr.bf16.mxu0 0
        %1501 = vmatmul.mubr.bf16.gmra.mxu0 %v1413
        %v1502 = vpop.f32.mrf.mxu0
        %v1503 = vadd.f32 %v1409, %v1502
        %v1504 = vpop.f32.mrf.mxu0
        %v1505 = vadd.f32 %v1409, %v1504
        %v1506 = vpop.f32.mrf.mxu0
        %v1507 = vpop.f32.mrf.mxu0
        %1508 = vdwg.mxu0
        %v1509 = vadd.f32 %v1462, %v323
        %v1510 = vadd.f32 %v1464, %v324
        %v1511 = vadd.f32 %v1503, %v325
        %v1512 = vadd.f32 %v1505, %v326
        %1513 = vst [vmem:[%s314] sm:$0xff] %v1509
        %1514 = vst [vmem:[%s314 + $0x8] sm:$0xff] %v1510
        %1515 = vst [vmem:[%s314 + $0x10] sm:$0xff] %v1511
        %1516 = vst [vmem:[%s314 + $0x18] sm:$0xff] %v1512
        %s1517 = sand.u32 %s204, 1
        %s1518 = scalar_lea.sflag [#allocation4], %s1517
        %s1519 = sand.u32 %s204, 1
        %s1520 = smul.addr %s1519, 32
        %s1521 = scalar_lea.vmem [#allocation5], %s1520
        // Predicated region
        $region57: #{tpu_custom_call.1} parent=51 // pred_check
          %p1522 = pneg %p214
        $region58: #{tpu_custom_call.1} parent=51 // pred_check_branch
          %1524 = sbr.rel (%p1522) target = $region60
        $region59: #{tpu_custom_call.1} parent=51 // pred_region
          %s1525 = smul.u32 4, %s23
          %s1527 = ssub.s32 512, 512
          %1528 = vsyncadd %s1518, %s1527
          %s1529 = smul.addr %s1525, 128
          %s1530 = scalar_lea.hbm %s8, %s1529
          %s1532 = sshll.u32 %s1521, 4
          %s1533 = int_to_ptr.vmem [resolvable:$true] %s1532
          %1535 = dma.vmem_to_hbm [thread:$0]  %s1533, 512, %s1530, %s1518
        $region60: #{tpu_custom_call.1} parent=51 // pred_fallthru
          _
      $region52: #{tpu_custom_call.1} parent=5 // pred_fallthru
        _
      %p1536 = scmp.le.s32.totalorder 2, %s18
      // Predicated region
      $region61: #{tpu_custom_call.1} parent=5 // pred_check
        %p1537 = pneg %p1536
      $region62: #{tpu_custom_call.1} parent=5 // pred_check_branch
        %1539 = sbr.rel (%p1537) target = $region64
      $region63: #{tpu_custom_call.1} parent=5 // pred_region
        %s1540 = ssub.s32 %s18, 2
        // Predicated region
        $region65: #{tpu_custom_call.1} parent=63 // pred_check
          %p1541 = pneg %p220
        $region66: #{tpu_custom_call.1} parent=63 // pred_check_branch
          %1543 = sbr.rel (%p1541) target = $region68
        $region67: #{tpu_custom_call.1} parent=63 // pred_region
          %s1544 = sand.u32 %s205, 1
          %s1545 = scalar_lea.sflag [#allocation4], %s1544
          %s1546 = sand.u32 %s205, 1
          %s1547 = smul.addr %s1546, 32
          %s1548 = scalar_lea.vmem [#allocation5], %s1547
          %1549 = dma.done %s1545, 512
        $region68: #{tpu_custom_call.1} parent=63 // pred_fallthru
          _
      $region64: #{tpu_custom_call.1} parent=5 // pred_fallthru
        _
    $region6: #{tpu_custom_call.1} parent=1 // loop_footer
      %s22 = sadd.s32 1, %s18
    $region7: #{tpu_custom_call.1} parent=1 // loop_footer_branch
      %17 = sbr.rel target = $region3
    $region8: #{tpu_custom_call.1} parent=1 // loop_exit
      _
    %1550 = vsyncpa [#allocation3], 1
    %s1551 = scalar_lea.sflag [#allocation3], 1
    %1552 = vsyncpa %s1551, 1
    %1553 = vsyncpa [#allocation4], 1
    %s1554 = scalar_lea.sflag [#allocation4], 1
    %1555 = vsyncpa %s1554, 1

</llo_original>
